<compile_context>
chip_gen: v7x
topology: tpu7x:2x2x1
jax: 0.10.0
libtpu: 0.0.40
codegen_flags: <defaults>
</compile_context>

<pallas_src>
import jax
import jax.numpy as jnp
from jax.experimental import pallas as pl
from jax.experimental.pallas import tpu as pltpu

HIDDEN = 256
N_OUT = 6
OUT_PAD = 128  # lane-dense padded output width (true out dim = 6)


def mlp_kernel(x_ref, w1_ref, b1_ref, w2_ref, b2_ref, w3_ref, b3_ref,
               w4_ref, b4_ref, o_ref):
    # ---- Layer 1: K=3 contraction as 3 broadcast-FMAs on the VPU (f32). ----
    x = x_ref[...].astype(jnp.float32)            # (tb, 3)
    w1 = w1_ref[...].astype(jnp.float32)          # (3, 256)
    h = (x[:, 0:1] * w1[0:1, :]
         + x[:, 1:2] * w1[1:2, :]
         + x[:, 2:3] * w1[2:3, :]) + b1_ref[...]
    h = jnp.maximum(h, 0.0)

    # ---- Layers 2-4 on the MXU; inputs may be bf16, accumulate in f32. ----
    cdt = w2_ref.dtype
    h = jnp.dot(h.astype(cdt), w2_ref[...], preferred_element_type=jnp.float32)
    h = jnp.maximum(h + b2_ref[...], 0.0)
    h = jnp.dot(h.astype(cdt), w3_ref[...], preferred_element_type=jnp.float32)
    h = jnp.maximum(h + b3_ref[...], 0.0)
    out = jnp.dot(h.astype(cdt), w4_ref[...], preferred_element_type=jnp.float32)
    out = out + b4_ref[...]
    o_ref[...] = out.astype(o_ref.dtype)          # (tb, 128) lane-dense store


def neural_net_forward(x, params, *, tb=256, compute_dtype=jnp.float32):
    """x: (B, 3) float32. params: weights (in, out), biases (1, out).

    tb: batch tile (multiple of 8; sweep 256-1024 on real workloads and keep
        padded_B // tb >= 2 on v7x so both TensorCores get work).
    compute_dtype: jnp.float32 or jnp.bfloat16 for the MXU matmul inputs
        (accumulation is always f32).
    """
    B, F = x.shape
    assert F == 3
    H = params["w2"].shape[0]

    # Lane-dense padded head (6 -> 128 output lanes).
    w4p = jnp.zeros((H, OUT_PAD), jnp.float32).at[:, :N_OUT].set(params["w4"])
    b4p = jnp.zeros((1, OUT_PAD), jnp.float32).at[:, :N_OUT].set(params["b4"])

    # Pad the batch to a multiple of the batch tile.
    Bp = ((B + tb - 1) // tb) * tb
    if Bp != B:
        x = jnp.pad(x, ((0, Bp - B), (0, 0)))

    cdt = compute_dtype
    w1 = params["w1"].astype(jnp.float32)   # first layer runs on the VPU in f32
    b1 = params["b1"].astype(jnp.float32)
    w2 = params["w2"].astype(cdt)
    b2 = params["b2"].astype(jnp.float32)
    w3 = params["w3"].astype(cdt)
    b3 = params["b3"].astype(jnp.float32)
    w4p = w4p.astype(cdt)

    full = lambda a: pl.BlockSpec(a.shape, lambda i: (0, 0))

    flops = 2 * Bp * (3 * H + H * H + H * H + H * OUT_PAD)
    bytes_accessed = (
        x.size * x.dtype.itemsize
        + Bp * OUT_PAD * 4
        + sum(int(a.size) * a.dtype.itemsize
              for a in (w1, b1, w2, b2, w3, b3, w4p, b4p)))

    out = pl.pallas_call(
        mlp_kernel,
        out_shape=jax.ShapeDtypeStruct((Bp, OUT_PAD), jnp.float32),
        grid_spec=pltpu.PrefetchScalarGridSpec(
            num_scalar_prefetch=0,
            grid=(Bp // tb,),
            in_specs=[
                pl.BlockSpec((tb, 3), lambda i: (i, 0)),
                full(w1), full(b1),
                full(w2), full(b2),
                full(w3), full(b3),
                full(w4p), full(b4p),
            ],
            out_specs=pl.BlockSpec((tb, OUT_PAD), lambda i: (i, 0)),
        ),
        compiler_params=pltpu.CompilerParams(
            dimension_semantics=("parallel",)),
        cost_estimate=pl.CostEstimate(
            flops=flops, transcendentals=0, bytes_accessed=bytes_accessed),
    )(x, w1, b1, w2, b2, w3, b3, w4p, b4p)

    return out[:B, :N_OUT]


def init_params(key):
    """Deterministic init mimicking nn.Linear's U(-1/sqrt(fan_in), 1/sqrt(fan_in))."""
    dims = [(3, HIDDEN), (HIDDEN, HIDDEN), (HIDDEN, HIDDEN), (HIDDEN, N_OUT)]
    params = {}
    for idx, (fan_in, fan_out) in enumerate(dims, start=1):
        key, kw, kb = jax.random.split(key, 3)
        bound = 1.0 / jnp.sqrt(float(fan_in))
        params[f"w{idx}"] = jax.random.uniform(
            kw, (fan_in, fan_out), jnp.float32, -bound, bound)
        params[f"b{idx}"] = jax.random.uniform(
            kb, (1, fan_out), jnp.float32, -bound, bound)
    return params


def reference_forward(x, p):
    h = jnp.maximum(x @ p["w1"] + p["b1"], 0.0)
    h = jnp.maximum(h @ p["w2"] + p["b2"], 0.0)
    h = jnp.maximum(h @ p["w3"] + p["b3"], 0.0)
    return h @ p["w4"] + p["b4"]


if __name__ == "__main__":
    key = jax.random.PRNGKey(0)
    key, kx = jax.random.split(key)
    batch = 8
    x = jax.random.normal(kx, (batch, 3), jnp.float32)
    params = init_params(key)

    ref = reference_forward(x, params)

    # f32 path: must match the PyTorch-equivalent reference tightly.
    out_f32 = jax.block_until_ready(neural_net_forward(x, params))
    assert out_f32.shape == (batch, N_OUT)
    assert jnp.allclose(out_f32, ref, atol=1e-4, rtol=1e-4), "f32 mismatch vs reference"

    # bf16 MXU-input path (v6e/v7x throughput); f32 accumulation, looser tolerance.
    out_bf16 = jax.block_until_ready(
        neural_net_forward(x, params, compute_dtype=jnp.bfloat16))
    assert out_bf16.shape == (batch, N_OUT)
    assert jnp.allclose(out_bf16, ref, atol=1e-1, rtol=5e-2), "bf16 mismatch vs reference"

    print("KERNEL_OK")
</pallas_src>

<mosaic_0001>
module attributes {stable_mosaic.version = 11 : i64} {
  func.func @mlp_kernel(%arg0: i32, %arg1: memref<256x3xf32, #tpu.memory_space<vmem>>, %arg2: memref<3x256xf32, #tpu.memory_space<vmem>>, %arg3: memref<1x256xf32, #tpu.memory_space<vmem>>, %arg4: memref<256x256xf32, #tpu.memory_space<vmem>>, %arg5: memref<1x256xf32, #tpu.memory_space<vmem>>, %arg6: memref<256x256xf32, #tpu.memory_space<vmem>>, %arg7: memref<1x256xf32, #tpu.memory_space<vmem>>, %arg8: memref<256x128xf32, #tpu.memory_space<vmem>>, %arg9: memref<1x128xf32, #tpu.memory_space<vmem>>, %arg10: memref<256x128xf32, #tpu.memory_space<vmem>>) attributes {dimension_semantics = [#tpu.dimension_semantics<parallel>], iteration_bounds = array<i64: 1>, scalar_prefetch = 0 : i64, scratch_operands = 0 : i64, tpu.core_type = #tpu.core_type<tc>, window_params = [{transform_indices = @transform_0, window_bounds = array<i64: 256, 3>}, {pipeline_mode = #tpu.pipeline_mode<synchronous>, transform_indices = @transform_1, window_bounds = array<i64: 3, 256>}, {pipeline_mode = #tpu.pipeline_mode<synchronous>, transform_indices = @transform_2, window_bounds = array<i64: 1, 256>}, {pipeline_mode = #tpu.pipeline_mode<synchronous>, transform_indices = @transform_3, window_bounds = array<i64: 256, 256>}, {pipeline_mode = #tpu.pipeline_mode<synchronous>, transform_indices = @transform_4, window_bounds = array<i64: 1, 256>}, {pipeline_mode = #tpu.pipeline_mode<synchronous>, transform_indices = @transform_5, window_bounds = array<i64: 256, 256>}, {pipeline_mode = #tpu.pipeline_mode<synchronous>, transform_indices = @transform_6, window_bounds = array<i64: 1, 256>}, {pipeline_mode = #tpu.pipeline_mode<synchronous>, transform_indices = @transform_7, window_bounds = array<i64: 256, 128>}, {pipeline_mode = #tpu.pipeline_mode<synchronous>, transform_indices = @transform_8, window_bounds = array<i64: 1, 128>}, {transform_indices = @transform_9, window_bounds = array<i64: 256, 128>}]} {
    %c0 = arith.constant 0 : index
    %c0_0 = arith.constant 0 : index
    %0 = vector.load %arg1[%c0, %c0_0] : memref<256x3xf32, #tpu.memory_space<vmem>>, vector<256x3xf32>
    %c0_1 = arith.constant 0 : index
    %c0_2 = arith.constant 0 : index
    %1 = vector.load %arg2[%c0_1, %c0_2] : memref<3x256xf32, #tpu.memory_space<vmem>>, vector<3x256xf32>
    %2 = vector.extract_strided_slice %0 {offsets = [0, 0], sizes = [256, 1], strides = [1, 1]} : vector<256x3xf32> to vector<256x1xf32>
    %3 = vector.extract_strided_slice %1 {offsets = [0, 0], sizes = [1, 256], strides = [1, 1]} : vector<3x256xf32> to vector<1x256xf32>
    %4 = vector.broadcast %2 : vector<256x1xf32> to vector<256x256xf32>
    %5 = vector.broadcast %3 : vector<1x256xf32> to vector<256x256xf32>
    %6 = arith.mulf %4, %5 : vector<256x256xf32>
    %7 = vector.extract_strided_slice %0 {offsets = [0, 1], sizes = [256, 1], strides = [1, 1]} : vector<256x3xf32> to vector<256x1xf32>
    %8 = vector.extract_strided_slice %1 {offsets = [1, 0], sizes = [1, 256], strides = [1, 1]} : vector<3x256xf32> to vector<1x256xf32>
    %9 = vector.broadcast %7 : vector<256x1xf32> to vector<256x256xf32>
    %10 = vector.broadcast %8 : vector<1x256xf32> to vector<256x256xf32>
    %11 = arith.mulf %9, %10 : vector<256x256xf32>
    %12 = arith.addf %6, %11 : vector<256x256xf32>
    %13 = vector.extract_strided_slice %0 {offsets = [0, 2], sizes = [256, 1], strides = [1, 1]} : vector<256x3xf32> to vector<256x1xf32>
    %14 = vector.extract_strided_slice %1 {offsets = [2, 0], sizes = [1, 256], strides = [1, 1]} : vector<3x256xf32> to vector<1x256xf32>
    %15 = vector.broadcast %13 : vector<256x1xf32> to vector<256x256xf32>
    %16 = vector.broadcast %14 : vector<1x256xf32> to vector<256x256xf32>
    %17 = arith.mulf %15, %16 : vector<256x256xf32>
    %18 = arith.addf %12, %17 : vector<256x256xf32>
    %c0_3 = arith.constant 0 : index
    %c0_4 = arith.constant 0 : index
    %19 = vector.load %arg3[%c0_3, %c0_4] : memref<1x256xf32, #tpu.memory_space<vmem>>, vector<1x256xf32>
    %20 = vector.broadcast %19 : vector<1x256xf32> to vector<256x256xf32>
    %21 = arith.addf %18, %20 : vector<256x256xf32>
    %cst = arith.constant 0.000000e+00 : f32
    %22 = vector.broadcast %cst : f32 to vector<256x256xf32>
    %23 = arith.maximumf %21, %22 : vector<256x256xf32>
    %c0_5 = arith.constant 0 : index
    %c0_6 = arith.constant 0 : index
    %24 = vector.load %arg4[%c0_5, %c0_6] : memref<256x256xf32, #tpu.memory_space<vmem>>, vector<256x256xf32>
    %cst_7 = arith.constant dense<0.000000e+00> : vector<256x256xf32>
    %25 = tpu.matmul %23, %24, %cst_7 {dimension_numbers = #tpu.dot_dimension_numbers<[1], [0], [0], [1], [0, 0, 1, 1], [], []>} : vector<256x256xf32>, vector<256x256xf32>, vector<256x256xf32> -> vector<256x256xf32>
    %c0_8 = arith.constant 0 : index
    %c0_9 = arith.constant 0 : index
    %26 = vector.load %arg5[%c0_8, %c0_9] : memref<1x256xf32, #tpu.memory_space<vmem>>, vector<1x256xf32>
    %27 = vector.broadcast %26 : vector<1x256xf32> to vector<256x256xf32>
    %28 = arith.addf %25, %27 : vector<256x256xf32>
    %cst_10 = arith.constant 0.000000e+00 : f32
    %29 = vector.broadcast %cst_10 : f32 to vector<256x256xf32>
    %30 = arith.maximumf %28, %29 : vector<256x256xf32>
    %c0_11 = arith.constant 0 : index
    %c0_12 = arith.constant 0 : index
    %31 = vector.load %arg6[%c0_11, %c0_12] : memref<256x256xf32, #tpu.memory_space<vmem>>, vector<256x256xf32>
    %cst_13 = arith.constant dense<0.000000e+00> : vector<256x256xf32>
    %32 = tpu.matmul %30, %31, %cst_13 {dimension_numbers = #tpu.dot_dimension_numbers<[1], [0], [0], [1], [0, 0, 1, 1], [], []>} : vector<256x256xf32>, vector<256x256xf32>, vector<256x256xf32> -> vector<256x256xf32>
    %c0_14 = arith.constant 0 : index
    %c0_15 = arith.constant 0 : index
    %33 = vector.load %arg7[%c0_14, %c0_15] : memref<1x256xf32, #tpu.memory_space<vmem>>, vector<1x256xf32>
    %34 = vector.broadcast %33 : vector<1x256xf32> to vector<256x256xf32>
    %35 = arith.addf %32, %34 : vector<256x256xf32>
    %cst_16 = arith.constant 0.000000e+00 : f32
    %36 = vector.broadcast %cst_16 : f32 to vector<256x256xf32>
    %37 = arith.maximumf %35, %36 : vector<256x256xf32>
    %c0_17 = arith.constant 0 : index
    %c0_18 = arith.constant 0 : index
    %38 = vector.load %arg8[%c0_17, %c0_18] : memref<256x128xf32, #tpu.memory_space<vmem>>, vector<256x128xf32>
    %cst_19 = arith.constant dense<0.000000e+00> : vector<256x128xf32>
    %39 = tpu.matmul %37, %38, %cst_19 {dimension_numbers = #tpu.dot_dimension_numbers<[1], [0], [0], [1], [0, 0, 1, 1], [], []>} : vector<256x256xf32>, vector<256x128xf32>, vector<256x128xf32> -> vector<256x128xf32>
    %c0_20 = arith.constant 0 : index
    %c0_21 = arith.constant 0 : index
    %40 = vector.load %arg9[%c0_20, %c0_21] : memref<1x128xf32, #tpu.memory_space<vmem>>, vector<1x128xf32>
    %41 = vector.broadcast %40 : vector<1x128xf32> to vector<256x128xf32>
    %42 = arith.addf %39, %41 : vector<256x128xf32>
    %c0_22 = arith.constant 0 : index
    %c0_23 = arith.constant 0 : index
    %43 = vector.load %arg10[%c0_22, %c0_23] : memref<256x128xf32, #tpu.memory_space<vmem>>, vector<256x128xf32>
    tpu.vector_store %arg10[%c0_22, %c0_23], %42 {strides = array<i32>} : memref<256x128xf32, #tpu.memory_space<vmem>>, vector<256x128xf32>,
    return
  }
  func.func @transform_0(%arg0: i32) -> (i32, i32) {
    %c0_i32 = arith.constant 0 : i32
    %c0_i32_0 = arith.constant 0 : i32
    return %arg0, %c0_i32 : i32, i32
  }
  func.func @transform_1(%arg0: i32) -> (i32, i32) {
    %c0_i32 = arith.constant 0 : i32
    %c0_i32_0 = arith.constant 0 : i32
    %c0_i32_1 = arith.constant 0 : i32
    return %c0_i32, %c0_i32_0 : i32, i32
  }
  func.func @transform_2(%arg0: i32) -> (i32, i32) {
    %c0_i32 = arith.constant 0 : i32
    %c0_i32_0 = arith.constant 0 : i32
    %c0_i32_1 = arith.constant 0 : i32
    return %c0_i32, %c0_i32_0 : i32, i32
  }
  func.func @transform_3(%arg0: i32) -> (i32, i32) {
    %c0_i32 = arith.constant 0 : i32
    %c0_i32_0 = arith.constant 0 : i32
    %c0_i32_1 = arith.constant 0 : i32
    return %c0_i32, %c0_i32_0 : i32, i32
  }
  func.func @transform_4(%arg0: i32) -> (i32, i32) {
    %c0_i32 = arith.constant 0 : i32
    %c0_i32_0 = arith.constant 0 : i32
    %c0_i32_1 = arith.constant 0 : i32
    return %c0_i32, %c0_i32_0 : i32, i32
  }
  func.func @transform_5(%arg0: i32) -> (i32, i32) {
    %c0_i32 = arith.constant 0 : i32
    %c0_i32_0 = arith.constant 0 : i32
    %c0_i32_1 = arith.constant 0 : i32
    return %c0_i32, %c0_i32_0 : i32, i32
  }
  func.func @transform_6(%arg0: i32) -> (i32, i32) {
    %c0_i32 = arith.constant 0 : i32
    %c0_i32_0 = arith.constant 0 : i32
    %c0_i32_1 = arith.constant 0 : i32
    return %c0_i32, %c0_i32_0 : i32, i32
  }
  func.func @transform_7(%arg0: i32) -> (i32, i32) {
    %c0_i32 = arith.constant 0 : i32
    %c0_i32_0 = arith.constant 0 : i32
    %c0_i32_1 = arith.constant 0 : i32
    return %c0_i32, %c0_i32_0 : i32, i32
  }
  func.func @transform_8(%arg0: i32) -> (i32, i32) {
    %c0_i32 = arith.constant 0 : i32
    %c0_i32_0 = arith.constant 0 : i32
    %c0_i32_1 = arith.constant 0 : i32
    return %c0_i32, %c0_i32_0 : i32, i32
  }
  func.func @transform_9(%arg0: i32) -> (i32, i32) {
    %c0_i32 = arith.constant 0 : i32
    %c0_i32_0 = arith.constant 0 : i32
    return %arg0, %c0_i32 : i32, i32
  }
}

</mosaic_0001>

<llo_original>
// kernel: tpu_custom_call.1
$region0: #{tpu_custom_call.1}
  #allocation0 [shape = 'u32[]', space=smem, size = 0x4, offset = 0x4, fixed_abs, tag = 'smem constant byte address 0x4 - core index']
  #allocation1 [shape = 'u32[144,128]{1,0:T(1,128)}', space=vmem, size = 0x12000, scoped, tag = 'internal scratch']
  %s0 = inlined_call_operand.vmem [shape: f32[256,3], index: 0, kind: input, shape index: {}]
  %s1 = inlined_call_operand.vmem [shape: f32[3,256], index: 1, kind: input, shape index: {}]
  %s2 = inlined_call_operand.vmem [shape: f32[1,256], index: 2, kind: input, shape index: {}]
  %s3 = inlined_call_operand.hbm [shape: f32[256,256], index: 3, kind: input, shape index: {}]
  %s4 = inlined_call_operand.vmem [shape: f32[1,256], index: 4, kind: input, shape index: {}]
  %s5 = inlined_call_operand.hbm [shape: f32[256,256], index: 5, kind: input, shape index: {}]
  %s6 = inlined_call_operand.vmem [shape: f32[1,256], index: 6, kind: input, shape index: {}]
  %s7 = inlined_call_operand.vmem [shape: f32[256,128], index: 7, kind: input, shape index: {}]
  %s8 = inlined_call_operand.vmem [shape: f32[1,128], index: 8, kind: input, shape index: {}]
  %s9 = inlined_call_operand.hbm [shape: f32[256,128], index: 9, kind: output, shape index: {}]
  %s10 = sld [smem:[#allocation0]]
  $region54: #{tpu_custom_call.1} parent=0
    _
  %s12 = ssub.s32 1, %s10
  %s13 = scalar_select 0, %s12, %s10
  $region1: #{tpu_custom_call.1} parent=0
    #allocation2 [shape = 'u8[262144]{0}', space=vmem, size = 0x40000, scoped, tag = 'input window, operand 3, single buffered']
    #allocation3 [shape = 's32[1]{0}', space=sflag, size = 0x4, scoped, tag = 'scoped memory for tpu_custom_call.1']
    #allocation4 [shape = 's32[1]{0}', space=sflag, size = 0x4, scoped, tag = 'scoped memory for tpu_custom_call.1']
    #allocation5 [shape = 'u8[262144]{0}', space=vmem, size = 0x40000, scoped, tag = 'input window, operand 5, single buffered']
    #allocation6 [shape = 's32[1]{0}', space=sflag, size = 0x4, scoped, tag = 'scoped memory for tpu_custom_call.1']
    #allocation7 [shape = 'u8[131072]{0}', space=vmem, size = 0x20000, scoped, tag = 'output window, operand 0, single buffered']
    %14 = vsyncpa [#allocation3], 0
    %15 = vsyncpa [#allocation6], 0
    %16 = vsyncpa [#allocation4], 0
    // Predicated region
    $region2: #{tpu_custom_call.1} parent=1 // pred_check
      _
    $region3: #{tpu_custom_call.1} parent=1 // pred_check_branch
      %18 = sbr.rel (0) target = $region5
    $region4: #{tpu_custom_call.1} parent=1 // pred_region
      _
    $region5: #{tpu_custom_call.1} parent=1 // pred_fallthru
      _
    // Predicated region
    $region6: #{tpu_custom_call.1} parent=1 // pred_check
      _
    $region7: #{tpu_custom_call.1} parent=1 // pred_check_branch
      %20 = sbr.rel (0) target = $region9
    $region8: #{tpu_custom_call.1} parent=1 // pred_region
      _
    $region9: #{tpu_custom_call.1} parent=1 // pred_fallthru
      _
    // Predicated region
    $region10: #{tpu_custom_call.1} parent=1 // pred_check
      _
    $region11: #{tpu_custom_call.1} parent=1 // pred_check_branch
      %22 = sbr.rel (0) target = $region13
    $region12: #{tpu_custom_call.1} parent=1 // pred_region
      _
    $region13: #{tpu_custom_call.1} parent=1 // pred_fallthru
      _
    // Predicated region
    $region14: #{tpu_custom_call.1} parent=1 // pred_check
      _
    $region15: #{tpu_custom_call.1} parent=1 // pred_check_branch
      %24 = sbr.rel (0) target = $region17
    $region16: #{tpu_custom_call.1} parent=1 // pred_region
      %s26 = ssub.s32 8192, 8192
      %27 = vsyncadd [#allocation3], %s26
      %s28 = sshll.u32 [#allocation2], 4
      %s29 = int_to_ptr.vmem [resolvable:$true] %s28
      %34 = dma.hbm_to_vmem [thread:$0]  %s3, 8192, %s29, [#allocation3], 256, 256, 16
    $region17: #{tpu_custom_call.1} parent=1 // pred_fallthru
      _
    // Predicated region
    $region18: #{tpu_custom_call.1} parent=1 // pred_check
      _
    $region19: #{tpu_custom_call.1} parent=1 // pred_check_branch
      %36 = sbr.rel (0) target = $region21
    $region20: #{tpu_custom_call.1} parent=1 // pred_region
      _
    $region21: #{tpu_custom_call.1} parent=1 // pred_fallthru
      _
    // Predicated region
    $region22: #{tpu_custom_call.1} parent=1 // pred_check
      _
    $region23: #{tpu_custom_call.1} parent=1 // pred_check_branch
      %38 = sbr.rel (0) target = $region25
    $region24: #{tpu_custom_call.1} parent=1 // pred_region
      %s40 = ssub.s32 8192, 8192
      %41 = vsyncadd [#allocation6], %s40
      %s42 = sshll.u32 [#allocation5], 4
      %s43 = int_to_ptr.vmem [resolvable:$true] %s42
      %48 = dma.hbm_to_vmem [thread:$0]  %s5, 8192, %s43, [#allocation6], 256, 256, 16
    $region25: #{tpu_custom_call.1} parent=1 // pred_fallthru
      _
    // Predicated region
    $region26: #{tpu_custom_call.1} parent=1 // pred_check
      _
    $region27: #{tpu_custom_call.1} parent=1 // pred_check_branch
      %50 = sbr.rel (0) target = $region29
    $region28: #{tpu_custom_call.1} parent=1 // pred_region
      _
    $region29: #{tpu_custom_call.1} parent=1 // pred_fallthru
      _
    // Predicated region
    $region30: #{tpu_custom_call.1} parent=1 // pred_check
      _
    $region31: #{tpu_custom_call.1} parent=1 // pred_check_branch
      %52 = sbr.rel (0) target = $region33
    $region32: #{tpu_custom_call.1} parent=1 // pred_region
      _
    $region33: #{tpu_custom_call.1} parent=1 // pred_fallthru
      _
    // Predicated region
    $region34: #{tpu_custom_call.1} parent=1 // pred_check
      _
    $region35: #{tpu_custom_call.1} parent=1 // pred_check_branch
      %54 = sbr.rel (0) target = $region37
    $region36: #{tpu_custom_call.1} parent=1 // pred_region
      _
    $region37: #{tpu_custom_call.1} parent=1 // pred_fallthru
      _
    // Predicated region
    $region38: #{tpu_custom_call.1} parent=1 // pred_check
      _
    $region39: #{tpu_custom_call.1} parent=1 // pred_check_branch
      %56 = sbr.rel (0) target = $region41
    $region40: #{tpu_custom_call.1} parent=1 // pred_region
      %57 = dma.done [#allocation3], 8192
    $region41: #{tpu_custom_call.1} parent=1 // pred_fallthru
      _
    // Predicated region
    $region42: #{tpu_custom_call.1} parent=1 // pred_check
      _
    $region43: #{tpu_custom_call.1} parent=1 // pred_check_branch
      %59 = sbr.rel (0) target = $region45
    $region44: #{tpu_custom_call.1} parent=1 // pred_region
      %60 = dma.done [#allocation6], 8192
    $region45: #{tpu_custom_call.1} parent=1 // pred_fallthru
      _
    %v61 = vld [vmem:[%s0] sm:$0xff]
    %v62 = vld [vmem:[%s0 + $0x8] sm:$0xff]
    %v63 = vld [vmem:[%s0 + $0x10] sm:$0xff]
    %v64 = vld [vmem:[%s0 + $0x18] sm:$0xff]
    %v65 = vld [vmem:[%s0 + $0x20] sm:$0xff]
    %v66 = vld [vmem:[%s0 + $0x28] sm:$0xff]
    %v67 = vld [vmem:[%s0 + $0x30] sm:$0xff]
    %v68 = vld [vmem:[%s0 + $0x38] sm:$0xff]
    %v69 = vld [vmem:[%s0 + $0x40] sm:$0xff]
    %v70 = vld [vmem:[%s0 + $0x48] sm:$0xff]
    %v71 = vld [vmem:[%s0 + $0x50] sm:$0xff]
    %v72 = vld [vmem:[%s0 + $0x58] sm:$0xff]
    %v73 = vld [vmem:[%s0 + $0x60] sm:$0xff]
    %v74 = vld [vmem:[%s0 + $0x68] sm:$0xff]
    %v75 = vld [vmem:[%s0 + $0x70] sm:$0xff]
    %v76 = vld [vmem:[%s0 + $0x78] sm:$0xff]
    %v77 = vld [vmem:[%s0 + $0x80] sm:$0xff]
    %v78 = vld [vmem:[%s0 + $0x88] sm:$0xff]
    %v79 = vld [vmem:[%s0 + $0x90] sm:$0xff]
    %v80 = vld [vmem:[%s0 + $0x98] sm:$0xff]
    %v81 = vld [vmem:[%s0 + $0xa0] sm:$0xff]
    %v82 = vld [vmem:[%s0 + $0xa8] sm:$0xff]
    %v83 = vld [vmem:[%s0 + $0xb0] sm:$0xff]
    %v84 = vld [vmem:[%s0 + $0xb8] sm:$0xff]
    %v85 = vld [vmem:[%s0 + $0xc0] sm:$0xff]
    %v86 = vld [vmem:[%s0 + $0xc8] sm:$0xff]
    %v87 = vld [vmem:[%s0 + $0xd0] sm:$0xff]
    %v88 = vld [vmem:[%s0 + $0xd8] sm:$0xff]
    %v89 = vld [vmem:[%s0 + $0xe0] sm:$0xff]
    %v90 = vld [vmem:[%s0 + $0xe8] sm:$0xff]
    %v91 = vld [vmem:[%s0 + $0xf0] sm:$0xff]
    %v92 = vld [vmem:[%s0 + $0xf8] sm:$0xff]
    %v93 = vld [vmem:[%s1] sm:$0x77]
    %95 = vset.pattern.permute.xlu0 0
    %96 = vperm.xlu0 %95, %v61
    %v97 = vpop.permute.xlu0 %96
    %100 = vset.pattern.permute.xlu0 0
    %101 = vperm.xlu0 %100, %v62
    %v102 = vpop.permute.xlu0 %101
    %105 = vset.pattern.permute.xlu0 0
    %106 = vperm.xlu0 %105, %v63
    %v107 = vpop.permute.xlu0 %106
    %110 = vset.pattern.permute.xlu0 0
    %111 = vperm.xlu0 %110, %v64
    %v112 = vpop.permute.xlu0 %111
    %115 = vset.pattern.permute.xlu0 0
    %116 = vperm.xlu0 %115, %v65
    %v117 = vpop.permute.xlu0 %116
    %120 = vset.pattern.permute.xlu0 0
    %121 = vperm.xlu0 %120, %v66
    %v122 = vpop.permute.xlu0 %121
    %125 = vset.pattern.permute.xlu0 0
    %126 = vperm.xlu0 %125, %v67
    %v127 = vpop.permute.xlu0 %126
    %130 = vset.pattern.permute.xlu0 0
    %131 = vperm.xlu0 %130, %v68
    %v132 = vpop.permute.xlu0 %131
    %135 = vset.pattern.permute.xlu0 0
    %136 = vperm.xlu0 %135, %v69
    %v137 = vpop.permute.xlu0 %136
    %140 = vset.pattern.permute.xlu0 0
    %141 = vperm.xlu0 %140, %v70
    %v142 = vpop.permute.xlu0 %141
    %145 = vset.pattern.permute.xlu0 0
    %146 = vperm.xlu0 %145, %v71
    %v147 = vpop.permute.xlu0 %146
    %150 = vset.pattern.permute.xlu0 0
    %151 = vperm.xlu0 %150, %v72
    %v152 = vpop.permute.xlu0 %151
    %155 = vset.pattern.permute.xlu0 0
    %156 = vperm.xlu0 %155, %v73
    %v157 = vpop.permute.xlu0 %156
    %160 = vset.pattern.permute.xlu0 0
    %161 = vperm.xlu0 %160, %v74
    %v162 = vpop.permute.xlu0 %161
    %165 = vset.pattern.permute.xlu0 0
    %166 = vperm.xlu0 %165, %v75
    %v167 = vpop.permute.xlu0 %166
    %170 = vset.pattern.permute.xlu0 0
    %171 = vperm.xlu0 %170, %v76
    %v172 = vpop.permute.xlu0 %171
    %175 = vset.pattern.permute.xlu0 0
    %176 = vperm.xlu0 %175, %v77
    %v177 = vpop.permute.xlu0 %176
    %180 = vset.pattern.permute.xlu0 0
    %181 = vperm.xlu0 %180, %v78
    %v182 = vpop.permute.xlu0 %181
    %185 = vset.pattern.permute.xlu0 0
    %186 = vperm.xlu0 %185, %v79
    %v187 = vpop.permute.xlu0 %186
    %190 = vset.pattern.permute.xlu0 0
    %191 = vperm.xlu0 %190, %v80
    %v192 = vpop.permute.xlu0 %191
    %195 = vset.pattern.permute.xlu0 0
    %196 = vperm.xlu0 %195, %v81
    %v197 = vpop.permute.xlu0 %196
    %200 = vset.pattern.permute.xlu0 0
    %201 = vperm.xlu0 %200, %v82
    %v202 = vpop.permute.xlu0 %201
    %205 = vset.pattern.permute.xlu0 0
    %206 = vperm.xlu0 %205, %v83
    %v207 = vpop.permute.xlu0 %206
    %210 = vset.pattern.permute.xlu0 0
    %211 = vperm.xlu0 %210, %v84
    %v212 = vpop.permute.xlu0 %211
    %215 = vset.pattern.permute.xlu0 0
    %216 = vperm.xlu0 %215, %v85
    %v217 = vpop.permute.xlu0 %216
    %220 = vset.pattern.permute.xlu0 0
    %221 = vperm.xlu0 %220, %v86
    %v222 = vpop.permute.xlu0 %221
    %225 = vset.pattern.permute.xlu0 0
    %226 = vperm.xlu0 %225, %v87
    %v227 = vpop.permute.xlu0 %226
    %230 = vset.pattern.permute.xlu0 0
    %231 = vperm.xlu0 %230, %v88
    %v232 = vpop.permute.xlu0 %231
    %235 = vset.pattern.permute.xlu0 0
    %236 = vperm.xlu0 %235, %v89
    %v237 = vpop.permute.xlu0 %236
    %240 = vset.pattern.permute.xlu0 0
    %241 = vperm.xlu0 %240, %v90
    %v242 = vpop.permute.xlu0 %241
    %245 = vset.pattern.permute.xlu0 0
    %246 = vperm.xlu0 %245, %v91
    %v247 = vpop.permute.xlu0 %246
    %250 = vset.pattern.permute.xlu0 0
    %251 = vperm.xlu0 %250, %v92
    %v252 = vpop.permute.xlu0 %251
    %v255 = vlaneseq
    %v256 = vshrl.u32 %v255, 7
    %v257 = vsub.s32 0, %v256
    %v258 = vrot.slane %v93, %v257
    %v259 = vlaneseq
    %v260 = vshrl.u32 %v259, 7
    %v261 = vsub.s32 4, %v260
    %v262 = vrot.slane %v93, %v261
    %v265 = vlaneseq
    %v266 = vshrl.u32 %v265, 7
    %v267 = vsub.s32 0, %v266
    %v268 = vrot.slane %v258, %v267
    %v269 = vlaneseq
    %v270 = vshrl.u32 %v269, 7
    %v271 = vsub.s32 0, %v270
    %v272 = vrot.slane %v262, %v271
    %v273 = vmul.f32 %v97, %v268
    %v274 = vmul.f32 %v97, %v272
    %v275 = vmul.f32 %v102, %v268
    %v276 = vmul.f32 %v102, %v272
    %v277 = vmul.f32 %v107, %v268
    %v278 = vmul.f32 %v107, %v272
    %v279 = vmul.f32 %v112, %v268
    %v280 = vmul.f32 %v112, %v272
    %v281 = vmul.f32 %v117, %v268
    %v282 = vmul.f32 %v117, %v272
    %v283 = vmul.f32 %v122, %v268
    %v284 = vmul.f32 %v122, %v272
    %v285 = vmul.f32 %v127, %v268
    %v286 = vmul.f32 %v127, %v272
    %v287 = vmul.f32 %v132, %v268
    %v288 = vmul.f32 %v132, %v272
    %v289 = vmul.f32 %v137, %v268
    %v290 = vmul.f32 %v137, %v272
    %v291 = vmul.f32 %v142, %v268
    %v292 = vmul.f32 %v142, %v272
    %v293 = vmul.f32 %v147, %v268
    %v294 = vmul.f32 %v147, %v272
    %v295 = vmul.f32 %v152, %v268
    %v296 = vmul.f32 %v152, %v272
    %v297 = vmul.f32 %v157, %v268
    %v298 = vmul.f32 %v157, %v272
    %v299 = vmul.f32 %v162, %v268
    %v300 = vmul.f32 %v162, %v272
    %v301 = vmul.f32 %v167, %v268
    %v302 = vmul.f32 %v167, %v272
    %v303 = vmul.f32 %v172, %v268
    %v304 = vmul.f32 %v172, %v272
    %v305 = vmul.f32 %v177, %v268
    %v306 = vmul.f32 %v177, %v272
    %v307 = vmul.f32 %v182, %v268
    %v308 = vmul.f32 %v182, %v272
    %v309 = vmul.f32 %v187, %v268
    %v310 = vmul.f32 %v187, %v272
    %v311 = vmul.f32 %v192, %v268
    %v312 = vmul.f32 %v192, %v272
    %v313 = vmul.f32 %v197, %v268
    %v314 = vmul.f32 %v197, %v272
    %v315 = vmul.f32 %v202, %v268
    %v316 = vmul.f32 %v202, %v272
    %v317 = vmul.f32 %v207, %v268
    %v318 = vmul.f32 %v207, %v272
    %v319 = vmul.f32 %v212, %v268
    %v320 = vmul.f32 %v212, %v272
    %v321 = vmul.f32 %v217, %v268
    %v322 = vmul.f32 %v217, %v272
    %v323 = vmul.f32 %v222, %v268
    %v324 = vmul.f32 %v222, %v272
    %v325 = vmul.f32 %v227, %v268
    %v326 = vmul.f32 %v227, %v272
    %v327 = vmul.f32 %v232, %v268
    %v328 = vmul.f32 %v232, %v272
    %v329 = vmul.f32 %v237, %v268
    %v330 = vmul.f32 %v237, %v272
    %v331 = vmul.f32 %v242, %v268
    %v332 = vmul.f32 %v242, %v272
    %v333 = vmul.f32 %v247, %v268
    %v334 = vmul.f32 %v247, %v272
    %v335 = vmul.f32 %v252, %v268
    %v336 = vmul.f32 %v252, %v272
    %337 = vset.pattern.permute.xlu0 1
    %338 = vperm.xlu0 %337, %v61
    %v339 = vpop.permute.xlu0 %338
    %341 = vset.pattern.permute.xlu0 1
    %342 = vperm.xlu0 %341, %v62
    %v343 = vpop.permute.xlu0 %342
    %345 = vset.pattern.permute.xlu0 1
    %346 = vperm.xlu0 %345, %v63
    %v347 = vpop.permute.xlu0 %346
    %349 = vset.pattern.permute.xlu0 1
    %350 = vperm.xlu0 %349, %v64
    %v351 = vpop.permute.xlu0 %350
    %353 = vset.pattern.permute.xlu0 1
    %354 = vperm.xlu0 %353, %v65
    %v355 = vpop.permute.xlu0 %354
    %357 = vset.pattern.permute.xlu0 1
    %358 = vperm.xlu0 %357, %v66
    %v359 = vpop.permute.xlu0 %358
    %361 = vset.pattern.permute.xlu0 1
    %362 = vperm.xlu0 %361, %v67
    %v363 = vpop.permute.xlu0 %362
    %365 = vset.pattern.permute.xlu0 1
    %366 = vperm.xlu0 %365, %v68
    %v367 = vpop.permute.xlu0 %366
    %369 = vset.pattern.permute.xlu0 1
    %370 = vperm.xlu0 %369, %v69
    %v371 = vpop.permute.xlu0 %370
    %373 = vset.pattern.permute.xlu0 1
    %374 = vperm.xlu0 %373, %v70
    %v375 = vpop.permute.xlu0 %374
    %377 = vset.pattern.permute.xlu0 1
    %378 = vperm.xlu0 %377, %v71
    %v379 = vpop.permute.xlu0 %378
    %381 = vset.pattern.permute.xlu0 1
    %382 = vperm.xlu0 %381, %v72
    %v383 = vpop.permute.xlu0 %382
    %385 = vset.pattern.permute.xlu0 1
    %386 = vperm.xlu0 %385, %v73
    %v387 = vpop.permute.xlu0 %386
    %389 = vset.pattern.permute.xlu0 1
    %390 = vperm.xlu0 %389, %v74
    %v391 = vpop.permute.xlu0 %390
    %393 = vset.pattern.permute.xlu0 1
    %394 = vperm.xlu0 %393, %v75
    %v395 = vpop.permute.xlu0 %394
    %397 = vset.pattern.permute.xlu0 1
    %398 = vperm.xlu0 %397, %v76
    %v399 = vpop.permute.xlu0 %398
    %401 = vset.pattern.permute.xlu0 1
    %402 = vperm.xlu0 %401, %v77
    %v403 = vpop.permute.xlu0 %402
    %405 = vset.pattern.permute.xlu0 1
    %406 = vperm.xlu0 %405, %v78
    %v407 = vpop.permute.xlu0 %406
    %409 = vset.pattern.permute.xlu0 1
    %410 = vperm.xlu0 %409, %v79
    %v411 = vpop.permute.xlu0 %410
    %413 = vset.pattern.permute.xlu0 1
    %414 = vperm.xlu0 %413, %v80
    %v415 = vpop.permute.xlu0 %414
    %417 = vset.pattern.permute.xlu0 1
    %418 = vperm.xlu0 %417, %v81
    %v419 = vpop.permute.xlu0 %418
    %421 = vset.pattern.permute.xlu0 1
    %422 = vperm.xlu0 %421, %v82
    %v423 = vpop.permute.xlu0 %422
    %425 = vset.pattern.permute.xlu0 1
    %426 = vperm.xlu0 %425, %v83
    %v427 = vpop.permute.xlu0 %426
    %429 = vset.pattern.permute.xlu0 1
    %430 = vperm.xlu0 %429, %v84
    %v431 = vpop.permute.xlu0 %430
    %433 = vset.pattern.permute.xlu0 1
    %434 = vperm.xlu0 %433, %v85
    %v435 = vpop.permute.xlu0 %434
    %437 = vset.pattern.permute.xlu0 1
    %438 = vperm.xlu0 %437, %v86
    %v439 = vpop.permute.xlu0 %438
    %441 = vset.pattern.permute.xlu0 1
    %442 = vperm.xlu0 %441, %v87
    %v443 = vpop.permute.xlu0 %442
    %445 = vset.pattern.permute.xlu0 1
    %446 = vperm.xlu0 %445, %v88
    %v447 = vpop.permute.xlu0 %446
    %449 = vset.pattern.permute.xlu0 1
    %450 = vperm.xlu0 %449, %v89
    %v451 = vpop.permute.xlu0 %450
    %453 = vset.pattern.permute.xlu0 1
    %454 = vperm.xlu0 %453, %v90
    %v455 = vpop.permute.xlu0 %454
    %457 = vset.pattern.permute.xlu0 1
    %458 = vperm.xlu0 %457, %v91
    %v459 = vpop.permute.xlu0 %458
    %461 = vset.pattern.permute.xlu0 1
    %462 = vperm.xlu0 %461, %v92
    %v463 = vpop.permute.xlu0 %462
    %v465 = vlaneseq
    %v466 = vshrl.u32 %v465, 7
    %v467 = vsub.s32 1, %v466
    %v468 = vrot.slane %v93, %v467
    %v469 = vlaneseq
    %v470 = vshrl.u32 %v469, 7
    %v471 = vsub.s32 5, %v470
    %v472 = vrot.slane %v93, %v471
    %v475 = vlaneseq
    %v476 = vshrl.u32 %v475, 7
    %v477 = vsub.s32 1, %v476
    %v478 = vrot.slane %v468, %v477
    %v479 = vlaneseq
    %v480 = vshrl.u32 %v479, 7
    %v481 = vsub.s32 1, %v480
    %v482 = vrot.slane %v472, %v481
    %v483 = vmul.f32 %v339, %v478
    %v484 = vmul.f32 %v339, %v482
    %v485 = vmul.f32 %v343, %v478
    %v486 = vmul.f32 %v343, %v482
    %v487 = vmul.f32 %v347, %v478
    %v488 = vmul.f32 %v347, %v482
    %v489 = vmul.f32 %v351, %v478
    %v490 = vmul.f32 %v351, %v482
    %v491 = vmul.f32 %v355, %v478
    %v492 = vmul.f32 %v355, %v482
    %v493 = vmul.f32 %v359, %v478
    %v494 = vmul.f32 %v359, %v482
    %v495 = vmul.f32 %v363, %v478
    %v496 = vmul.f32 %v363, %v482
    %v497 = vmul.f32 %v367, %v478
    %v498 = vmul.f32 %v367, %v482
    %v499 = vmul.f32 %v371, %v478
    %v500 = vmul.f32 %v371, %v482
    %v501 = vmul.f32 %v375, %v478
    %v502 = vmul.f32 %v375, %v482
    %v503 = vmul.f32 %v379, %v478
    %v504 = vmul.f32 %v379, %v482
    %v505 = vmul.f32 %v383, %v478
    %v506 = vmul.f32 %v383, %v482
    %v507 = vmul.f32 %v387, %v478
    %v508 = vmul.f32 %v387, %v482
    %v509 = vmul.f32 %v391, %v478
    %v510 = vmul.f32 %v391, %v482
    %v511 = vmul.f32 %v395, %v478
    %v512 = vmul.f32 %v395, %v482
    %v513 = vmul.f32 %v399, %v478
    %v514 = vmul.f32 %v399, %v482
    %v515 = vmul.f32 %v403, %v478
    %v516 = vmul.f32 %v403, %v482
    %v517 = vmul.f32 %v407, %v478
    %v518 = vmul.f32 %v407, %v482
    %v519 = vmul.f32 %v411, %v478
    %v520 = vmul.f32 %v411, %v482
    %v521 = vmul.f32 %v415, %v478
    %v522 = vmul.f32 %v415, %v482
    %v523 = vmul.f32 %v419, %v478
    %v524 = vmul.f32 %v419, %v482
    %v525 = vmul.f32 %v423, %v478
    %v526 = vmul.f32 %v423, %v482
    %v527 = vmul.f32 %v427, %v478
    %v528 = vmul.f32 %v427, %v482
    %v529 = vmul.f32 %v431, %v478
    %v530 = vmul.f32 %v431, %v482
    %v531 = vmul.f32 %v435, %v478
    %v532 = vmul.f32 %v435, %v482
    %v533 = vmul.f32 %v439, %v478
    %v534 = vmul.f32 %v439, %v482
    %v535 = vmul.f32 %v443, %v478
    %v536 = vmul.f32 %v443, %v482
    %v537 = vmul.f32 %v447, %v478
    %v538 = vmul.f32 %v447, %v482
    %v539 = vmul.f32 %v451, %v478
    %v540 = vmul.f32 %v451, %v482
    %v541 = vmul.f32 %v455, %v478
    %v542 = vmul.f32 %v455, %v482
    %v543 = vmul.f32 %v459, %v478
    %v544 = vmul.f32 %v459, %v482
    %v545 = vmul.f32 %v463, %v478
    %v546 = vmul.f32 %v463, %v482
    %v547 = vadd.f32 %v273, %v483
    %v548 = vadd.f32 %v274, %v484
    %v549 = vadd.f32 %v275, %v485
    %v550 = vadd.f32 %v276, %v486
    %v551 = vadd.f32 %v277, %v487
    %v552 = vadd.f32 %v278, %v488
    %v553 = vadd.f32 %v279, %v489
    %v554 = vadd.f32 %v280, %v490
    %v555 = vadd.f32 %v281, %v491
    %v556 = vadd.f32 %v282, %v492
    %v557 = vadd.f32 %v283, %v493
    %v558 = vadd.f32 %v284, %v494
    %v559 = vadd.f32 %v285, %v495
    %v560 = vadd.f32 %v286, %v496
    %v561 = vadd.f32 %v287, %v497
    %v562 = vadd.f32 %v288, %v498
    %v563 = vadd.f32 %v289, %v499
    %v564 = vadd.f32 %v290, %v500
    %v565 = vadd.f32 %v291, %v501
    %v566 = vadd.f32 %v292, %v502
    %v567 = vadd.f32 %v293, %v503
    %v568 = vadd.f32 %v294, %v504
    %v569 = vadd.f32 %v295, %v505
    %v570 = vadd.f32 %v296, %v506
    %v571 = vadd.f32 %v297, %v507
    %v572 = vadd.f32 %v298, %v508
    %v573 = vadd.f32 %v299, %v509
    %v574 = vadd.f32 %v300, %v510
    %v575 = vadd.f32 %v301, %v511
    %v576 = vadd.f32 %v302, %v512
    %v577 = vadd.f32 %v303, %v513
    %v578 = vadd.f32 %v304, %v514
    %v579 = vadd.f32 %v305, %v515
    %v580 = vadd.f32 %v306, %v516
    %v581 = vadd.f32 %v307, %v517
    %v582 = vadd.f32 %v308, %v518
    %v583 = vadd.f32 %v309, %v519
    %v584 = vadd.f32 %v310, %v520
    %v585 = vadd.f32 %v311, %v521
    %v586 = vadd.f32 %v312, %v522
    %v587 = vadd.f32 %v313, %v523
    %v588 = vadd.f32 %v314, %v524
    %v589 = vadd.f32 %v315, %v525
    %v590 = vadd.f32 %v316, %v526
    %v591 = vadd.f32 %v317, %v527
    %v592 = vadd.f32 %v318, %v528
    %v593 = vadd.f32 %v319, %v529
    %v594 = vadd.f32 %v320, %v530
    %v595 = vadd.f32 %v321, %v531
    %v596 = vadd.f32 %v322, %v532
    %v597 = vadd.f32 %v323, %v533
    %v598 = vadd.f32 %v324, %v534
    %v599 = vadd.f32 %v325, %v535
    %v600 = vadd.f32 %v326, %v536
    %v601 = vadd.f32 %v327, %v537
    %v602 = vadd.f32 %v328, %v538
    %v603 = vadd.f32 %v329, %v539
    %v604 = vadd.f32 %v330, %v540
    %v605 = vadd.f32 %v331, %v541
    %v606 = vadd.f32 %v332, %v542
    %v607 = vadd.f32 %v333, %v543
    %v608 = vadd.f32 %v334, %v544
    %v609 = vadd.f32 %v335, %v545
    %v610 = vadd.f32 %v336, %v546
    %611 = vset.pattern.permute.xlu0 2
    %612 = vperm.xlu0 %611, %v61
    %v613 = vpop.permute.xlu0 %612
    %615 = vset.pattern.permute.xlu0 2
    %616 = vperm.xlu0 %615, %v62
    %v617 = vpop.permute.xlu0 %616
    %619 = vset.pattern.permute.xlu0 2
    %620 = vperm.xlu0 %619, %v63
    %v621 = vpop.permute.xlu0 %620
    %623 = vset.pattern.permute.xlu0 2
    %624 = vperm.xlu0 %623, %v64
    %v625 = vpop.permute.xlu0 %624
    %627 = vset.pattern.permute.xlu0 2
    %628 = vperm.xlu0 %627, %v65
    %v629 = vpop.permute.xlu0 %628
    %631 = vset.pattern.permute.xlu0 2
    %632 = vperm.xlu0 %631, %v66
    %v633 = vpop.permute.xlu0 %632
    %635 = vset.pattern.permute.xlu0 2
    %636 = vperm.xlu0 %635, %v67
    %v637 = vpop.permute.xlu0 %636
    %639 = vset.pattern.permute.xlu0 2
    %640 = vperm.xlu0 %639, %v68
    %v641 = vpop.permute.xlu0 %640
    %643 = vset.pattern.permute.xlu0 2
    %644 = vperm.xlu0 %643, %v69
    %v645 = vpop.permute.xlu0 %644
    %647 = vset.pattern.permute.xlu0 2
    %648 = vperm.xlu0 %647, %v70
    %v649 = vpop.permute.xlu0 %648
    %651 = vset.pattern.permute.xlu0 2
    %652 = vperm.xlu0 %651, %v71
    %v653 = vpop.permute.xlu0 %652
    %655 = vset.pattern.permute.xlu0 2
    %656 = vperm.xlu0 %655, %v72
    %v657 = vpop.permute.xlu0 %656
    %659 = vset.pattern.permute.xlu0 2
    %660 = vperm.xlu0 %659, %v73
    %v661 = vpop.permute.xlu0 %660
    %663 = vset.pattern.permute.xlu0 2
    %664 = vperm.xlu0 %663, %v74
    %v665 = vpop.permute.xlu0 %664
    %667 = vset.pattern.permute.xlu0 2
    %668 = vperm.xlu0 %667, %v75
    %v669 = vpop.permute.xlu0 %668
    %671 = vset.pattern.permute.xlu0 2
    %672 = vperm.xlu0 %671, %v76
    %v673 = vpop.permute.xlu0 %672
    %675 = vset.pattern.permute.xlu0 2
    %676 = vperm.xlu0 %675, %v77
    %v677 = vpop.permute.xlu0 %676
    %679 = vset.pattern.permute.xlu0 2
    %680 = vperm.xlu0 %679, %v78
    %v681 = vpop.permute.xlu0 %680
    %683 = vset.pattern.permute.xlu0 2
    %684 = vperm.xlu0 %683, %v79
    %v685 = vpop.permute.xlu0 %684
    %687 = vset.pattern.permute.xlu0 2
    %688 = vperm.xlu0 %687, %v80
    %v689 = vpop.permute.xlu0 %688
    %691 = vset.pattern.permute.xlu0 2
    %692 = vperm.xlu0 %691, %v81
    %v693 = vpop.permute.xlu0 %692
    %695 = vset.pattern.permute.xlu0 2
    %696 = vperm.xlu0 %695, %v82
    %v697 = vpop.permute.xlu0 %696
    %699 = vset.pattern.permute.xlu0 2
    %700 = vperm.xlu0 %699, %v83
    %v701 = vpop.permute.xlu0 %700
    %703 = vset.pattern.permute.xlu0 2
    %704 = vperm.xlu0 %703, %v84
    %v705 = vpop.permute.xlu0 %704
    %707 = vset.pattern.permute.xlu0 2
    %708 = vperm.xlu0 %707, %v85
    %v709 = vpop.permute.xlu0 %708
    %711 = vset.pattern.permute.xlu0 2
    %712 = vperm.xlu0 %711, %v86
    %v713 = vpop.permute.xlu0 %712
    %715 = vset.pattern.permute.xlu0 2
    %716 = vperm.xlu0 %715, %v87
    %v717 = vpop.permute.xlu0 %716
    %719 = vset.pattern.permute.xlu0 2
    %720 = vperm.xlu0 %719, %v88
    %v721 = vpop.permute.xlu0 %720
    %723 = vset.pattern.permute.xlu0 2
    %724 = vperm.xlu0 %723, %v89
    %v725 = vpop.permute.xlu0 %724
    %727 = vset.pattern.permute.xlu0 2
    %728 = vperm.xlu0 %727, %v90
    %v729 = vpop.permute.xlu0 %728
    %731 = vset.pattern.permute.xlu0 2
    %732 = vperm.xlu0 %731, %v91
    %v733 = vpop.permute.xlu0 %732
    %735 = vset.pattern.permute.xlu0 2
    %736 = vperm.xlu0 %735, %v92
    %v737 = vpop.permute.xlu0 %736
    %v739 = vlaneseq
    %v740 = vshrl.u32 %v739, 7
    %v741 = vsub.s32 2, %v740
    %v742 = vrot.slane %v93, %v741
    %v743 = vlaneseq
    %v744 = vshrl.u32 %v743, 7
    %v745 = vsub.s32 6, %v744
    %v746 = vrot.slane %v93, %v745
    %v749 = vlaneseq
    %v750 = vshrl.u32 %v749, 7
    %v751 = vsub.s32 2, %v750
    %v752 = vrot.slane %v742, %v751
    %v753 = vlaneseq
    %v754 = vshrl.u32 %v753, 7
    %v755 = vsub.s32 2, %v754
    %v756 = vrot.slane %v746, %v755
    %v757 = vmul.f32 %v613, %v752
    %v758 = vmul.f32 %v613, %v756
    %v759 = vmul.f32 %v617, %v752
    %v760 = vmul.f32 %v617, %v756
    %v761 = vmul.f32 %v621, %v752
    %v762 = vmul.f32 %v621, %v756
    %v763 = vmul.f32 %v625, %v752
    %v764 = vmul.f32 %v625, %v756
    %v765 = vmul.f32 %v629, %v752
    %v766 = vmul.f32 %v629, %v756
    %v767 = vmul.f32 %v633, %v752
    %v768 = vmul.f32 %v633, %v756
    %v769 = vmul.f32 %v637, %v752
    %v770 = vmul.f32 %v637, %v756
    %v771 = vmul.f32 %v641, %v752
    %v772 = vmul.f32 %v641, %v756
    %v773 = vmul.f32 %v645, %v752
    %v774 = vmul.f32 %v645, %v756
    %v775 = vmul.f32 %v649, %v752
    %v776 = vmul.f32 %v649, %v756
    %v777 = vmul.f32 %v653, %v752
    %v778 = vmul.f32 %v653, %v756
    %v779 = vmul.f32 %v657, %v752
    %v780 = vmul.f32 %v657, %v756
    %v781 = vmul.f32 %v661, %v752
    %v782 = vmul.f32 %v661, %v756
    %v783 = vmul.f32 %v665, %v752
    %v784 = vmul.f32 %v665, %v756
    %v785 = vmul.f32 %v669, %v752
    %v786 = vmul.f32 %v669, %v756
    %v787 = vmul.f32 %v673, %v752
    %v788 = vmul.f32 %v673, %v756
    %v789 = vmul.f32 %v677, %v752
    %v790 = vmul.f32 %v677, %v756
    %v791 = vmul.f32 %v681, %v752
    %v792 = vmul.f32 %v681, %v756
    %v793 = vmul.f32 %v685, %v752
    %v794 = vmul.f32 %v685, %v756
    %v795 = vmul.f32 %v689, %v752
    %v796 = vmul.f32 %v689, %v756
    %v797 = vmul.f32 %v693, %v752
    %v798 = vmul.f32 %v693, %v756
    %v799 = vmul.f32 %v697, %v752
    %v800 = vmul.f32 %v697, %v756
    %v801 = vmul.f32 %v701, %v752
    %v802 = vmul.f32 %v701, %v756
    %v803 = vmul.f32 %v705, %v752
    %v804 = vmul.f32 %v705, %v756
    %v805 = vmul.f32 %v709, %v752
    %v806 = vmul.f32 %v709, %v756
    %v807 = vmul.f32 %v713, %v752
    %v808 = vmul.f32 %v713, %v756
    %v809 = vmul.f32 %v717, %v752
    %v810 = vmul.f32 %v717, %v756
    %v811 = vmul.f32 %v721, %v752
    %v812 = vmul.f32 %v721, %v756
    %v813 = vmul.f32 %v725, %v752
    %v814 = vmul.f32 %v725, %v756
    %v815 = vmul.f32 %v729, %v752
    %v816 = vmul.f32 %v729, %v756
    %v817 = vmul.f32 %v733, %v752
    %v818 = vmul.f32 %v733, %v756
    %v819 = vmul.f32 %v737, %v752
    %v820 = vmul.f32 %v737, %v756
    %v821 = vadd.f32 %v547, %v757
    %v822 = vadd.f32 %v548, %v758
    %v823 = vadd.f32 %v549, %v759
    %v824 = vadd.f32 %v550, %v760
    %v825 = vadd.f32 %v551, %v761
    %v826 = vadd.f32 %v552, %v762
    %v827 = vadd.f32 %v553, %v763
    %v828 = vadd.f32 %v554, %v764
    %v829 = vadd.f32 %v555, %v765
    %v830 = vadd.f32 %v556, %v766
    %v831 = vadd.f32 %v557, %v767
    %v832 = vadd.f32 %v558, %v768
    %v833 = vadd.f32 %v559, %v769
    %v834 = vadd.f32 %v560, %v770
    %v835 = vadd.f32 %v561, %v771
    %v836 = vadd.f32 %v562, %v772
    %v837 = vadd.f32 %v563, %v773
    %v838 = vadd.f32 %v564, %v774
    %v839 = vadd.f32 %v565, %v775
    %v840 = vadd.f32 %v566, %v776
    %v841 = vadd.f32 %v567, %v777
    %v842 = vadd.f32 %v568, %v778
    %v843 = vadd.f32 %v569, %v779
    %v844 = vadd.f32 %v570, %v780
    %v845 = vadd.f32 %v571, %v781
    %v846 = vadd.f32 %v572, %v782
    %v847 = vadd.f32 %v573, %v783
    %v848 = vadd.f32 %v574, %v784
    %v849 = vadd.f32 %v575, %v785
    %v850 = vadd.f32 %v576, %v786
    %v851 = vadd.f32 %v577, %v787
    %v852 = vadd.f32 %v578, %v788
    %v853 = vadd.f32 %v579, %v789
    %v854 = vadd.f32 %v580, %v790
    %v855 = vadd.f32 %v581, %v791
    %v856 = vadd.f32 %v582, %v792
    %v857 = vadd.f32 %v583, %v793
    %v858 = vadd.f32 %v584, %v794
    %v859 = vadd.f32 %v585, %v795
    %v860 = vadd.f32 %v586, %v796
    %v861 = vadd.f32 %v587, %v797
    %v862 = vadd.f32 %v588, %v798
    %v863 = vadd.f32 %v589, %v799
    %v864 = vadd.f32 %v590, %v800
    %v865 = vadd.f32 %v591, %v801
    %v866 = vadd.f32 %v592, %v802
    %v867 = vadd.f32 %v593, %v803
    %v868 = vadd.f32 %v594, %v804
    %v869 = vadd.f32 %v595, %v805
    %v870 = vadd.f32 %v596, %v806
    %v871 = vadd.f32 %v597, %v807
    %v872 = vadd.f32 %v598, %v808
    %v873 = vadd.f32 %v599, %v809
    %v874 = vadd.f32 %v600, %v810
    %v875 = vadd.f32 %v601, %v811
    %v876 = vadd.f32 %v602, %v812
    %v877 = vadd.f32 %v603, %v813
    %v878 = vadd.f32 %v604, %v814
    %v879 = vadd.f32 %v605, %v815
    %v880 = vadd.f32 %v606, %v816
    %v881 = vadd.f32 %v607, %v817
    %v882 = vadd.f32 %v608, %v818
    %v883 = vadd.f32 %v609, %v819
    %v884 = vadd.f32 %v610, %v820
    %v885 = vld [vmem:[%s2] sm:$0x3]
    %v887 = vlaneseq
    %v888 = vshrl.u32 %v887, 7
    %v889 = vsub.s32 0, %v888
    %v890 = vrot.slane %v885, %v889
    %v891 = vlaneseq
    %v892 = vshrl.u32 %v891, 7
    %v893 = vsub.s32 1, %v892
    %v894 = vrot.slane %v885, %v893
    %v897 = vadd.f32 %v821, %v890
    %v898 = vadd.f32 %v822, %v894
    %v899 = vadd.f32 %v823, %v890
    %v900 = vadd.f32 %v824, %v894
    %v901 = vadd.f32 %v825, %v890
    %v902 = vadd.f32 %v826, %v894
    %v903 = vadd.f32 %v827, %v890
    %v904 = vadd.f32 %v828, %v894
    %v905 = vadd.f32 %v829, %v890
    %v906 = vadd.f32 %v830, %v894
    %v907 = vadd.f32 %v831, %v890
    %v908 = vadd.f32 %v832, %v894
    %v909 = vadd.f32 %v833, %v890
    %v910 = vadd.f32 %v834, %v894
    %v911 = vadd.f32 %v835, %v890
    %v912 = vadd.f32 %v836, %v894
    %v913 = vadd.f32 %v837, %v890
    %v914 = vadd.f32 %v838, %v894
    %v915 = vadd.f32 %v839, %v890
    %v916 = vadd.f32 %v840, %v894
    %v917 = vadd.f32 %v841, %v890
    %v918 = vadd.f32 %v842, %v894
    %v919 = vadd.f32 %v843, %v890
    %v920 = vadd.f32 %v844, %v894
    %v921 = vadd.f32 %v845, %v890
    %v922 = vadd.f32 %v846, %v894
    %v923 = vadd.f32 %v847, %v890
    %v924 = vadd.f32 %v848, %v894
    %v925 = vadd.f32 %v849, %v890
    %v926 = vadd.f32 %v850, %v894
    %v927 = vadd.f32 %v851, %v890
    %v928 = vadd.f32 %v852, %v894
    %v929 = vadd.f32 %v853, %v890
    %v930 = vadd.f32 %v854, %v894
    %v931 = vadd.f32 %v855, %v890
    %v932 = vadd.f32 %v856, %v894
    %v933 = vadd.f32 %v857, %v890
    %v934 = vadd.f32 %v858, %v894
    %v935 = vadd.f32 %v859, %v890
    %v936 = vadd.f32 %v860, %v894
    %v937 = vadd.f32 %v861, %v890
    %v938 = vadd.f32 %v862, %v894
    %v939 = vadd.f32 %v863, %v890
    %v940 = vadd.f32 %v864, %v894
    %v941 = vadd.f32 %v865, %v890
    %v942 = vadd.f32 %v866, %v894
    %v943 = vadd.f32 %v867, %v890
    %v944 = vadd.f32 %v868, %v894
    %v945 = vadd.f32 %v869, %v890
    %v946 = vadd.f32 %v870, %v894
    %v947 = vadd.f32 %v871, %v890
    %v948 = vadd.f32 %v872, %v894
    %v949 = vadd.f32 %v873, %v890
    %v950 = vadd.f32 %v874, %v894
    %v951 = vadd.f32 %v875, %v890
    %v952 = vadd.f32 %v876, %v894
    %v953 = vadd.f32 %v877, %v890
    %v954 = vadd.f32 %v878, %v894
    %v955 = vadd.f32 %v879, %v890
    %v956 = vadd.f32 %v880, %v894
    %v957 = vadd.f32 %v881, %v890
    %v958 = vadd.f32 %v882, %v894
    %v959 = vadd.f32 %v883, %v890
    %v960 = vadd.f32 %v884, %v894
    %v961 = vmax.f32 %v897, 0.0
    %v962 = vmax.f32 %v898, 0.0
    %v963 = vmax.f32 %v899, 0.0
    %v964 = vmax.f32 %v900, 0.0
    %v965 = vmax.f32 %v901, 0.0
    %v966 = vmax.f32 %v902, 0.0
    %v967 = vmax.f32 %v903, 0.0
    %v968 = vmax.f32 %v904, 0.0
    %v969 = vmax.f32 %v905, 0.0
    %v970 = vmax.f32 %v906, 0.0
    %v971 = vmax.f32 %v907, 0.0
    %v972 = vmax.f32 %v908, 0.0
    %v973 = vmax.f32 %v909, 0.0
    %v974 = vmax.f32 %v910, 0.0
    %v975 = vmax.f32 %v911, 0.0
    %v976 = vmax.f32 %v912, 0.0
    %v977 = vmax.f32 %v913, 0.0
    %v978 = vmax.f32 %v914, 0.0
    %v979 = vmax.f32 %v915, 0.0
    %v980 = vmax.f32 %v916, 0.0
    %v981 = vmax.f32 %v917, 0.0
    %v982 = vmax.f32 %v918, 0.0
    %v983 = vmax.f32 %v919, 0.0
    %v984 = vmax.f32 %v920, 0.0
    %v985 = vmax.f32 %v921, 0.0
    %v986 = vmax.f32 %v922, 0.0
    %v987 = vmax.f32 %v923, 0.0
    %v988 = vmax.f32 %v924, 0.0
    %v989 = vmax.f32 %v925, 0.0
    %v990 = vmax.f32 %v926, 0.0
    %v991 = vmax.f32 %v927, 0.0
    %v992 = vmax.f32 %v928, 0.0
    %v993 = vmax.f32 %v929, 0.0
    %v994 = vmax.f32 %v930, 0.0
    %v995 = vmax.f32 %v931, 0.0
    %v996 = vmax.f32 %v932, 0.0
    %v997 = vmax.f32 %v933, 0.0
    %v998 = vmax.f32 %v934, 0.0
    %v999 = vmax.f32 %v935, 0.0
    %v1000 = vmax.f32 %v936, 0.0
    %v1001 = vmax.f32 %v937, 0.0
    %v1002 = vmax.f32 %v938, 0.0
    %v1003 = vmax.f32 %v939, 0.0
    %v1004 = vmax.f32 %v940, 0.0
    %v1005 = vmax.f32 %v941, 0.0
    %v1006 = vmax.f32 %v942, 0.0
    %v1007 = vmax.f32 %v943, 0.0
    %v1008 = vmax.f32 %v944, 0.0
    %v1009 = vmax.f32 %v945, 0.0
    %v1010 = vmax.f32 %v946, 0.0
    %v1011 = vmax.f32 %v947, 0.0
    %v1012 = vmax.f32 %v948, 0.0
    %v1013 = vmax.f32 %v949, 0.0
    %v1014 = vmax.f32 %v950, 0.0
    %v1015 = vmax.f32 %v951, 0.0
    %v1016 = vmax.f32 %v952, 0.0
    %v1017 = vmax.f32 %v953, 0.0
    %v1018 = vmax.f32 %v954, 0.0
    %v1019 = vmax.f32 %v955, 0.0
    %v1020 = vmax.f32 %v956, 0.0
    %v1021 = vmax.f32 %v957, 0.0
    %v1022 = vmax.f32 %v958, 0.0
    %v1023 = vmax.f32 %v959, 0.0
    %v1024 = vmax.f32 %v960, 0.0
    %v1025 = vld [vmem:[#allocation2] sm:$0xff]
    %v1026 = vld [vmem:[#allocation2 + $0x8] sm:$0xff]
    %v1027 = vld [vmem:[#allocation2 + $0x10] sm:$0xff]
    %v1028 = vld [vmem:[#allocation2 + $0x18] sm:$0xff]
    %v1029 = vld [vmem:[#allocation2 + $0x20] sm:$0xff]
    %v1030 = vld [vmem:[#allocation2 + $0x28] sm:$0xff]
    %v1031 = vld [vmem:[#allocation2 + $0x30] sm:$0xff]
    %v1032 = vld [vmem:[#allocation2 + $0x38] sm:$0xff]
    %v1033 = vld [vmem:[#allocation2 + $0x40] sm:$0xff]
    %v1034 = vld [vmem:[#allocation2 + $0x48] sm:$0xff]
    %v1035 = vld [vmem:[#allocation2 + $0x50] sm:$0xff]
    %v1036 = vld [vmem:[#allocation2 + $0x58] sm:$0xff]
    %v1037 = vld [vmem:[#allocation2 + $0x60] sm:$0xff]
    %v1038 = vld [vmem:[#allocation2 + $0x68] sm:$0xff]
    %v1039 = vld [vmem:[#allocation2 + $0x70] sm:$0xff]
    %v1040 = vld [vmem:[#allocation2 + $0x78] sm:$0xff]
    %v1041 = vld [vmem:[#allocation2 + $0x80] sm:$0xff]
    %v1042 = vld [vmem:[#allocation2 + $0x88] sm:$0xff]
    %v1043 = vld [vmem:[#allocation2 + $0x90] sm:$0xff]
    %v1044 = vld [vmem:[#allocation2 + $0x98] sm:$0xff]
    %v1045 = vld [vmem:[#allocation2 + $0xa0] sm:$0xff]
    %v1046 = vld [vmem:[#allocation2 + $0xa8] sm:$0xff]
    %v1047 = vld [vmem:[#allocation2 + $0xb0] sm:$0xff]
    %v1048 = vld [vmem:[#allocation2 + $0xb8] sm:$0xff]
    %v1049 = vld [vmem:[#allocation2 + $0xc0] sm:$0xff]
    %v1050 = vld [vmem:[#allocation2 + $0xc8] sm:$0xff]
    %v1051 = vld [vmem:[#allocation2 + $0xd0] sm:$0xff]
    %v1052 = vld [vmem:[#allocation2 + $0xd8] sm:$0xff]
    %v1053 = vld [vmem:[#allocation2 + $0xe0] sm:$0xff]
    %v1054 = vld [vmem:[#allocation2 + $0xe8] sm:$0xff]
    %v1055 = vld [vmem:[#allocation2 + $0xf0] sm:$0xff]
    %v1056 = vld [vmem:[#allocation2 + $0xf8] sm:$0xff]
    %v1057 = vld [vmem:[#allocation2 + $0x100] sm:$0xff]
    %v1058 = vld [vmem:[#allocation2 + $0x108] sm:$0xff]
    %v1059 = vld [vmem:[#allocation2 + $0x110] sm:$0xff]
    %v1060 = vld [vmem:[#allocation2 + $0x118] sm:$0xff]
    %v1061 = vld [vmem:[#allocation2 + $0x120] sm:$0xff]
    %v1062 = vld [vmem:[#allocation2 + $0x128] sm:$0xff]
    %v1063 = vld [vmem:[#allocation2 + $0x130] sm:$0xff]
    %v1064 = vld [vmem:[#allocation2 + $0x138] sm:$0xff]
    %v1065 = vld [vmem:[#allocation2 + $0x140] sm:$0xff]
    %v1066 = vld [vmem:[#allocation2 + $0x148] sm:$0xff]
    %v1067 = vld [vmem:[#allocation2 + $0x150] sm:$0xff]
    %v1068 = vld [vmem:[#allocation2 + $0x158] sm:$0xff]
    %v1069 = vld [vmem:[#allocation2 + $0x160] sm:$0xff]
    %v1070 = vld [vmem:[#allocation2 + $0x168] sm:$0xff]
    %v1071 = vld [vmem:[#allocation2 + $0x170] sm:$0xff]
    %v1072 = vld [vmem:[#allocation2 + $0x178] sm:$0xff]
    %v1073 = vld [vmem:[#allocation2 + $0x180] sm:$0xff]
    %v1074 = vld [vmem:[#allocation2 + $0x188] sm:$0xff]
    %v1075 = vld [vmem:[#allocation2 + $0x190] sm:$0xff]
    %v1076 = vld [vmem:[#allocation2 + $0x198] sm:$0xff]
    %v1077 = vld [vmem:[#allocation2 + $0x1a0] sm:$0xff]
    %v1078 = vld [vmem:[#allocation2 + $0x1a8] sm:$0xff]
    %v1079 = vld [vmem:[#allocation2 + $0x1b0] sm:$0xff]
    %v1080 = vld [vmem:[#allocation2 + $0x1b8] sm:$0xff]
    %v1081 = vld [vmem:[#allocation2 + $0x1c0] sm:$0xff]
    %v1082 = vld [vmem:[#allocation2 + $0x1c8] sm:$0xff]
    %v1083 = vld [vmem:[#allocation2 + $0x1d0] sm:$0xff]
    %v1084 = vld [vmem:[#allocation2 + $0x1d8] sm:$0xff]
    %v1085 = vld [vmem:[#allocation2 + $0x1e0] sm:$0xff]
    %v1086 = vld [vmem:[#allocation2 + $0x1e8] sm:$0xff]
    %v1087 = vld [vmem:[#allocation2 + $0x1f0] sm:$0xff]
    %v1088 = vld [vmem:[#allocation2 + $0x1f8] sm:$0xff]
    %v1089 = vld [vmem:[%s4] sm:$0x3]
    %v1091 = vlaneseq
    %v1092 = vshrl.u32 %v1091, 7
    %v1093 = vsub.s32 0, %v1092
    %v1094 = vrot.slane %v1089, %v1093
    %v1095 = vlaneseq
    %v1096 = vshrl.u32 %v1095, 7
    %v1097 = vsub.s32 1, %v1096
    %v1098 = vrot.slane %v1089, %v1097
    %1101 = vmatprep.subr.mxu0 %v1026
    %1102 = vmatpush1.msra.mxu0 %v1025
    %1103 = vmatprep.subr.mxu0 %v1028
    %1104 = vmatpush1.msra.mxu0 %v1027
    %1105 = vmatprep.subr.mxu0 %v1030
    %1106 = vmatpush1.msra.mxu0 %v1029
    %1107 = vmatprep.subr.mxu0 %v1032
    %1108 = vmatpush1.msra.mxu0 %v1031
    %1109 = vmatprep.subr.mxu0 %v1034
    %1110 = vmatpush1.msra.mxu0 %v1033
    %1111 = vmatprep.subr.mxu0 %v1036
    %1112 = vmatpush1.msra.mxu0 %v1035
    %1113 = vmatprep.subr.mxu0 %v1038
    %1114 = vmatpush1.msra.mxu0 %v1037
    %1115 = vmatprep.subr.mxu0 %v1040
    %1116 = vmatpush1.msra.mxu0 %v1039
    %1117 = vmatprep.subr.mxu0 %v1042
    %1118 = vmatpush1.msra.mxu0 %v1041
    %1119 = vmatprep.subr.mxu0 %v1044
    %1120 = vmatpush1.msra.mxu0 %v1043
    %1121 = vmatprep.subr.mxu0 %v1046
    %1122 = vmatpush1.msra.mxu0 %v1045
    %1123 = vmatprep.subr.mxu0 %v1048
    %1124 = vmatpush1.msra.mxu0 %v1047
    %1125 = vmatprep.subr.mxu0 %v1050
    %1126 = vmatpush1.msra.mxu0 %v1049
    %1127 = vmatprep.subr.mxu0 %v1052
    %1128 = vmatpush1.msra.mxu0 %v1051
    %1129 = vmatprep.subr.mxu0 %v1054
    %1130 = vmatpush1.msra.mxu0 %v1053
    %1131 = vmatprep.subr.mxu0 %v1056
    %1132 = vmatpush1.msra.mxu0 %v1055
    %1133 = vmatprep.subr.mxu0 %v1058
    %1134 = vmatpush1.msra.mxu0 %v1057
    %1135 = vmatprep.subr.mxu0 %v1060
    %1136 = vmatpush1.msra.mxu0 %v1059
    %1137 = vmatprep.subr.mxu0 %v1062
    %1138 = vmatpush1.msra.mxu0 %v1061
    %1139 = vmatprep.subr.mxu0 %v1064
    %1140 = vmatpush1.msra.mxu0 %v1063
    %1141 = vmatprep.subr.mxu0 %v1066
    %1142 = vmatpush1.msra.mxu0 %v1065
    %1143 = vmatprep.subr.mxu0 %v1068
    %1144 = vmatpush1.msra.mxu0 %v1067
    %1145 = vmatprep.subr.mxu0 %v1070
    %1146 = vmatpush1.msra.mxu0 %v1069
    %1147 = vmatprep.subr.mxu0 %v1072
    %1148 = vmatpush1.msra.mxu0 %v1071
    %1149 = vmatprep.subr.mxu0 %v1074
    %1150 = vmatpush1.msra.mxu0 %v1073
    %1151 = vmatprep.subr.mxu0 %v1076
    %1152 = vmatpush1.msra.mxu0 %v1075
    %1153 = vmatprep.subr.mxu0 %v1078
    %1154 = vmatpush1.msra.mxu0 %v1077
    %1155 = vmatprep.subr.mxu0 %v1080
    %1156 = vmatpush1.msra.mxu0 %v1079
    %1157 = vmatprep.subr.mxu0 %v1082
    %1158 = vmatpush1.msra.mxu0 %v1081
    %1159 = vmatprep.subr.mxu0 %v1084
    %1160 = vmatpush1.msra.mxu0 %v1083
    %1161 = vmatprep.subr.mxu0 %v1086
    %1162 = vmatpush1.msra.mxu0 %v1085
    %1163 = vmatprep.subr.mxu0 %v1088
    %1164 = vmatpush1.msra.mxu0 %v1087
    %1165 = vmatprep.mubr.f32.mxu0 %v962
    %1166 = vmatmul.mubr.f32.gmra.mrb[0].mxu0 %v961
    %v1167 = vpop.f32.mrb[0].mxu0
    %v1168 = vadd.f32 %v1094, %v1167
    %v1169 = vpop.f32.mrb[0].mxu0
    %v1170 = vadd.f32 %v1098, %v1169
    %1171 = vmatprep.mubr.f32.mxu0 %v964
    %1172 = vmatmul.mubr.f32.gmra.mrb[0].mxu0 %v963
    %v1173 = vpop.f32.mrb[0].mxu0
    %v1174 = vadd.f32 %v1094, %v1173
    %v1175 = vpop.f32.mrb[0].mxu0
    %v1176 = vadd.f32 %v1098, %v1175
    %1177 = vmatprep.mubr.f32.mxu0 %v966
    %1178 = vmatmul.mubr.f32.gmra.mrb[0].mxu0 %v965
    %v1179 = vpop.f32.mrb[0].mxu0
    %v1180 = vadd.f32 %v1094, %v1179
    %v1181 = vpop.f32.mrb[0].mxu0
    %v1182 = vadd.f32 %v1098, %v1181
    %1183 = vmatprep.mubr.f32.mxu0 %v968
    %1184 = vmatmul.mubr.f32.gmra.mrb[0].mxu0 %v967
    %v1185 = vpop.f32.mrb[0].mxu0
    %v1186 = vadd.f32 %v1094, %v1185
    %v1187 = vpop.f32.mrb[0].mxu0
    %v1188 = vadd.f32 %v1098, %v1187
    %1189 = vmatprep.mubr.f32.mxu0 %v970
    %1190 = vmatmul.mubr.f32.gmra.mrb[0].mxu0 %v969
    %v1191 = vpop.f32.mrb[0].mxu0
    %v1192 = vadd.f32 %v1094, %v1191
    %v1193 = vpop.f32.mrb[0].mxu0
    %v1194 = vadd.f32 %v1098, %v1193
    %1195 = vmatprep.mubr.f32.mxu0 %v972
    %1196 = vmatmul.mubr.f32.gmra.mrb[0].mxu0 %v971
    %v1197 = vpop.f32.mrb[0].mxu0
    %v1198 = vadd.f32 %v1094, %v1197
    %v1199 = vpop.f32.mrb[0].mxu0
    %v1200 = vadd.f32 %v1098, %v1199
    %1201 = vmatprep.mubr.f32.mxu0 %v974
    %1202 = vmatmul.mubr.f32.gmra.mrb[0].mxu0 %v973
    %v1203 = vpop.f32.mrb[0].mxu0
    %v1204 = vadd.f32 %v1094, %v1203
    %v1205 = vpop.f32.mrb[0].mxu0
    %v1206 = vadd.f32 %v1098, %v1205
    %1207 = vmatprep.mubr.f32.mxu0 %v976
    %1208 = vmatmul.mubr.f32.gmra.mrb[0].mxu0 %v975
    %v1209 = vpop.f32.mrb[0].mxu0
    %v1210 = vadd.f32 %v1094, %v1209
    %v1211 = vpop.f32.mrb[0].mxu0
    %v1212 = vadd.f32 %v1098, %v1211
    %1213 = vmatprep.mubr.f32.mxu0 %v978
    %1214 = vmatmul.mubr.f32.gmra.mrb[0].mxu0 %v977
    %v1215 = vpop.f32.mrb[0].mxu0
    %v1216 = vadd.f32 %v1094, %v1215
    %v1217 = vpop.f32.mrb[0].mxu0
    %v1218 = vadd.f32 %v1098, %v1217
    %1219 = vmatprep.mubr.f32.mxu0 %v980
    %1220 = vmatmul.mubr.f32.gmra.mrb[0].mxu0 %v979
    %v1221 = vpop.f32.mrb[0].mxu0
    %v1222 = vadd.f32 %v1094, %v1221
    %v1223 = vpop.f32.mrb[0].mxu0
    %v1224 = vadd.f32 %v1098, %v1223
    %1225 = vmatprep.mubr.f32.mxu0 %v982
    %1226 = vmatmul.mubr.f32.gmra.mrb[0].mxu0 %v981
    %v1227 = vpop.f32.mrb[0].mxu0
    %v1228 = vadd.f32 %v1094, %v1227
    %v1229 = vpop.f32.mrb[0].mxu0
    %v1230 = vadd.f32 %v1098, %v1229
    %1231 = vmatprep.mubr.f32.mxu0 %v984
    %1232 = vmatmul.mubr.f32.gmra.mrb[0].mxu0 %v983
    %v1233 = vpop.f32.mrb[0].mxu0
    %v1234 = vadd.f32 %v1094, %v1233
    %v1235 = vpop.f32.mrb[0].mxu0
    %v1236 = vadd.f32 %v1098, %v1235
    %1237 = vmatprep.mubr.f32.mxu0 %v986
    %1238 = vmatmul.mubr.f32.gmra.mrb[0].mxu0 %v985
    %v1239 = vpop.f32.mrb[0].mxu0
    %v1240 = vadd.f32 %v1094, %v1239
    %v1241 = vpop.f32.mrb[0].mxu0
    %v1242 = vadd.f32 %v1098, %v1241
    %1243 = vmatprep.mubr.f32.mxu0 %v988
    %1244 = vmatmul.mubr.f32.gmra.mrb[0].mxu0 %v987
    %v1245 = vpop.f32.mrb[0].mxu0
    %v1246 = vadd.f32 %v1094, %v1245
    %v1247 = vpop.f32.mrb[0].mxu0
    %v1248 = vadd.f32 %v1098, %v1247
    %1249 = vmatprep.mubr.f32.mxu0 %v990
    %1250 = vmatmul.mubr.f32.gmra.mrb[0].mxu0 %v989
    %v1251 = vpop.f32.mrb[0].mxu0
    %v1252 = vadd.f32 %v1094, %v1251
    %v1253 = vpop.f32.mrb[0].mxu0
    %v1254 = vadd.f32 %v1098, %v1253
    %1255 = vmatprep.mubr.f32.mxu0 %v992
    %1256 = vmatmul.mubr.f32.gmra.mrb[0].mxu0 %v991
    %v1257 = vpop.f32.mrb[0].mxu0
    %v1258 = vadd.f32 %v1094, %v1257
    %v1259 = vpop.f32.mrb[0].mxu0
    %v1260 = vadd.f32 %v1098, %v1259
    %1261 = vmatprep.mubr.f32.mxu0 %v994
    %1262 = vmatmul.mubr.f32.gmra.mrb[0].mxu0 %v993
    %v1263 = vpop.f32.mrb[0].mxu0
    %v1264 = vadd.f32 %v1094, %v1263
    %v1265 = vpop.f32.mrb[0].mxu0
    %v1266 = vadd.f32 %v1098, %v1265
    %1267 = vmatprep.mubr.f32.mxu0 %v996
    %1268 = vmatmul.mubr.f32.gmra.mrb[0].mxu0 %v995
    %v1269 = vpop.f32.mrb[0].mxu0
    %v1270 = vadd.f32 %v1094, %v1269
    %v1271 = vpop.f32.mrb[0].mxu0
    %v1272 = vadd.f32 %v1098, %v1271
    %1273 = vmatprep.mubr.f32.mxu0 %v998
    %1274 = vmatmul.mubr.f32.gmra.mrb[0].mxu0 %v997
    %v1275 = vpop.f32.mrb[0].mxu0
    %v1276 = vadd.f32 %v1094, %v1275
    %v1277 = vpop.f32.mrb[0].mxu0
    %v1278 = vadd.f32 %v1098, %v1277
    %1279 = vmatprep.mubr.f32.mxu0 %v1000
    %1280 = vmatmul.mubr.f32.gmra.mrb[0].mxu0 %v999
    %v1281 = vpop.f32.mrb[0].mxu0
    %v1282 = vadd.f32 %v1094, %v1281
    %v1283 = vpop.f32.mrb[0].mxu0
    %v1284 = vadd.f32 %v1098, %v1283
    %1285 = vmatprep.mubr.f32.mxu0 %v1002
    %1286 = vmatmul.mubr.f32.gmra.mrb[0].mxu0 %v1001
    %v1287 = vpop.f32.mrb[0].mxu0
    %v1288 = vadd.f32 %v1094, %v1287
    %v1289 = vpop.f32.mrb[0].mxu0
    %v1290 = vadd.f32 %v1098, %v1289
    %1291 = vmatprep.mubr.f32.mxu0 %v1004
    %1292 = vmatmul.mubr.f32.gmra.mrb[0].mxu0 %v1003
    %v1293 = vpop.f32.mrb[0].mxu0
    %v1294 = vadd.f32 %v1094, %v1293
    %v1295 = vpop.f32.mrb[0].mxu0
    %v1296 = vadd.f32 %v1098, %v1295
    %1297 = vmatprep.mubr.f32.mxu0 %v1006
    %1298 = vmatmul.mubr.f32.gmra.mrb[0].mxu0 %v1005
    %v1299 = vpop.f32.mrb[0].mxu0
    %v1300 = vadd.f32 %v1094, %v1299
    %v1301 = vpop.f32.mrb[0].mxu0
    %v1302 = vadd.f32 %v1098, %v1301
    %1303 = vmatprep.mubr.f32.mxu0 %v1008
    %1304 = vmatmul.mubr.f32.gmra.mrb[0].mxu0 %v1007
    %v1305 = vpop.f32.mrb[0].mxu0
    %v1306 = vadd.f32 %v1094, %v1305
    %v1307 = vpop.f32.mrb[0].mxu0
    %v1308 = vadd.f32 %v1098, %v1307
    %1309 = vmatprep.mubr.f32.mxu0 %v1010
    %1310 = vmatmul.mubr.f32.gmra.mrb[0].mxu0 %v1009
    %v1311 = vpop.f32.mrb[0].mxu0
    %v1312 = vadd.f32 %v1094, %v1311
    %v1313 = vpop.f32.mrb[0].mxu0
    %v1314 = vadd.f32 %v1098, %v1313
    %1315 = vmatprep.mubr.f32.mxu0 %v1012
    %1316 = vmatmul.mubr.f32.gmra.mrb[0].mxu0 %v1011
    %v1317 = vpop.f32.mrb[0].mxu0
    %v1318 = vadd.f32 %v1094, %v1317
    %v1319 = vpop.f32.mrb[0].mxu0
    %v1320 = vadd.f32 %v1098, %v1319
    %1321 = vmatprep.mubr.f32.mxu0 %v1014
    %1322 = vmatmul.mubr.f32.gmra.mrb[0].mxu0 %v1013
    %v1323 = vpop.f32.mrb[0].mxu0
    %v1324 = vadd.f32 %v1094, %v1323
    %v1325 = vpop.f32.mrb[0].mxu0
    %v1326 = vadd.f32 %v1098, %v1325
    %1327 = vmatprep.mubr.f32.mxu0 %v1016
    %1328 = vmatmul.mubr.f32.gmra.mrb[0].mxu0 %v1015
    %v1329 = vpop.f32.mrb[0].mxu0
    %v1330 = vadd.f32 %v1094, %v1329
    %v1331 = vpop.f32.mrb[0].mxu0
    %v1332 = vadd.f32 %v1098, %v1331
    %1333 = vmatprep.mubr.f32.mxu0 %v1018
    %1334 = vmatmul.mubr.f32.gmra.mrb[0].mxu0 %v1017
    %v1335 = vpop.f32.mrb[0].mxu0
    %v1336 = vadd.f32 %v1094, %v1335
    %v1337 = vpop.f32.mrb[0].mxu0
    %v1338 = vadd.f32 %v1098, %v1337
    %1339 = vmatprep.mubr.f32.mxu0 %v1020
    %1340 = vmatmul.mubr.f32.gmra.mrb[0].mxu0 %v1019
    %v1341 = vpop.f32.mrb[0].mxu0
    %v1342 = vadd.f32 %v1094, %v1341
    %v1343 = vpop.f32.mrb[0].mxu0
    %v1344 = vadd.f32 %v1098, %v1343
    %1345 = vmatprep.mubr.f32.mxu0 %v1022
    %1346 = vmatmul.mubr.f32.gmra.mrb[0].mxu0 %v1021
    %v1347 = vpop.f32.mrb[0].mxu0
    %v1348 = vadd.f32 %v1094, %v1347
    %v1349 = vpop.f32.mrb[0].mxu0
    %v1350 = vadd.f32 %v1098, %v1349
    %1351 = vmatprep.mubr.f32.mxu0 %v1024
    %1352 = vmatmul.mubr.f32.gmra.mrb[0].mxu0 %v1023
    %v1353 = vpop.f32.mrb[0].mxu0
    %v1354 = vadd.f32 %v1094, %v1353
    %v1355 = vpop.f32.mrb[0].mxu0
    %v1356 = vadd.f32 %v1098, %v1355
    %1357 = vdwg.mxu0
    %v1358 = vmax.f32 %v1168, 0.0
    %v1359 = vmax.f32 %v1170, 0.0
    %v1360 = vmax.f32 %v1174, 0.0
    %v1361 = vmax.f32 %v1176, 0.0
    %v1362 = vmax.f32 %v1180, 0.0
    %v1363 = vmax.f32 %v1182, 0.0
    %v1364 = vmax.f32 %v1186, 0.0
    %v1365 = vmax.f32 %v1188, 0.0
    %v1366 = vmax.f32 %v1192, 0.0
    %v1367 = vmax.f32 %v1194, 0.0
    %v1368 = vmax.f32 %v1198, 0.0
    %v1369 = vmax.f32 %v1200, 0.0
    %v1370 = vmax.f32 %v1204, 0.0
    %v1371 = vmax.f32 %v1206, 0.0
    %v1372 = vmax.f32 %v1210, 0.0
    %v1373 = vmax.f32 %v1212, 0.0
    %v1374 = vmax.f32 %v1216, 0.0
    %v1375 = vmax.f32 %v1218, 0.0
    %v1376 = vmax.f32 %v1222, 0.0
    %v1377 = vmax.f32 %v1224, 0.0
    %v1378 = vmax.f32 %v1228, 0.0
    %v1379 = vmax.f32 %v1230, 0.0
    %v1380 = vmax.f32 %v1234, 0.0
    %v1381 = vmax.f32 %v1236, 0.0
    %v1382 = vmax.f32 %v1240, 0.0
    %v1383 = vmax.f32 %v1242, 0.0
    %v1384 = vmax.f32 %v1246, 0.0
    %v1385 = vmax.f32 %v1248, 0.0
    %v1386 = vmax.f32 %v1252, 0.0
    %v1387 = vmax.f32 %v1254, 0.0
    %v1388 = vmax.f32 %v1258, 0.0
    %v1389 = vmax.f32 %v1260, 0.0
    %v1390 = vmax.f32 %v1264, 0.0
    %v1391 = vmax.f32 %v1266, 0.0
    %v1392 = vmax.f32 %v1270, 0.0
    %v1393 = vmax.f32 %v1272, 0.0
    %v1394 = vmax.f32 %v1276, 0.0
    %v1395 = vmax.f32 %v1278, 0.0
    %v1396 = vmax.f32 %v1282, 0.0
    %v1397 = vmax.f32 %v1284, 0.0
    %v1398 = vmax.f32 %v1288, 0.0
    %v1399 = vmax.f32 %v1290, 0.0
    %v1400 = vmax.f32 %v1294, 0.0
    %v1401 = vmax.f32 %v1296, 0.0
    %v1402 = vmax.f32 %v1300, 0.0
    %v1403 = vmax.f32 %v1302, 0.0
    %v1404 = vmax.f32 %v1306, 0.0
    %v1405 = vmax.f32 %v1308, 0.0
    %v1406 = vmax.f32 %v1312, 0.0
    %v1407 = vmax.f32 %v1314, 0.0
    %v1408 = vmax.f32 %v1318, 0.0
    %v1409 = vmax.f32 %v1320, 0.0
    %v1410 = vmax.f32 %v1324, 0.0
    %v1411 = vmax.f32 %v1326, 0.0
    %v1412 = vmax.f32 %v1330, 0.0
    %v1413 = vmax.f32 %v1332, 0.0
    %v1414 = vmax.f32 %v1336, 0.0
    %v1415 = vmax.f32 %v1338, 0.0
    %v1416 = vmax.f32 %v1342, 0.0
    %v1417 = vmax.f32 %v1344, 0.0
    %v1418 = vmax.f32 %v1348, 0.0
    %v1419 = vmax.f32 %v1350, 0.0
    %v1420 = vmax.f32 %v1354, 0.0
    %v1421 = vmax.f32 %v1356, 0.0
    %v1422 = vld [vmem:[#allocation5] sm:$0xff]
    %v1423 = vld [vmem:[#allocation5 + $0x8] sm:$0xff]
    %v1424 = vld [vmem:[#allocation5 + $0x10] sm:$0xff]
    %v1425 = vld [vmem:[#allocation5 + $0x18] sm:$0xff]
    %v1426 = vld [vmem:[#allocation5 + $0x20] sm:$0xff]
    %v1427 = vld [vmem:[#allocation5 + $0x28] sm:$0xff]
    %v1428 = vld [vmem:[#allocation5 + $0x30] sm:$0xff]
    %v1429 = vld [vmem:[#allocation5 + $0x38] sm:$0xff]
    %v1430 = vld [vmem:[#allocation5 + $0x40] sm:$0xff]
    %v1431 = vld [vmem:[#allocation5 + $0x48] sm:$0xff]
    %v1432 = vld [vmem:[#allocation5 + $0x50] sm:$0xff]
    %v1433 = vld [vmem:[#allocation5 + $0x58] sm:$0xff]
    %v1434 = vld [vmem:[#allocation5 + $0x60] sm:$0xff]
    %v1435 = vld [vmem:[#allocation5 + $0x68] sm:$0xff]
    %v1436 = vld [vmem:[#allocation5 + $0x70] sm:$0xff]
    %v1437 = vld [vmem:[#allocation5 + $0x78] sm:$0xff]
    %v1438 = vld [vmem:[#allocation5 + $0x80] sm:$0xff]
    %v1439 = vld [vmem:[#allocation5 + $0x88] sm:$0xff]
    %v1440 = vld [vmem:[#allocation5 + $0x90] sm:$0xff]
    %v1441 = vld [vmem:[#allocation5 + $0x98] sm:$0xff]
    %v1442 = vld [vmem:[#allocation5 + $0xa0] sm:$0xff]
    %v1443 = vld [vmem:[#allocation5 + $0xa8] sm:$0xff]
    %v1444 = vld [vmem:[#allocation5 + $0xb0] sm:$0xff]
    %v1445 = vld [vmem:[#allocation5 + $0xb8] sm:$0xff]
    %v1446 = vld [vmem:[#allocation5 + $0xc0] sm:$0xff]
    %v1447 = vld [vmem:[#allocation5 + $0xc8] sm:$0xff]
    %v1448 = vld [vmem:[#allocation5 + $0xd0] sm:$0xff]
    %v1449 = vld [vmem:[#allocation5 + $0xd8] sm:$0xff]
    %v1450 = vld [vmem:[#allocation5 + $0xe0] sm:$0xff]
    %v1451 = vld [vmem:[#allocation5 + $0xe8] sm:$0xff]
    %v1452 = vld [vmem:[#allocation5 + $0xf0] sm:$0xff]
    %v1453 = vld [vmem:[#allocation5 + $0xf8] sm:$0xff]
    %v1454 = vld [vmem:[#allocation5 + $0x100] sm:$0xff]
    %v1455 = vld [vmem:[#allocation5 + $0x108] sm:$0xff]
    %v1456 = vld [vmem:[#allocation5 + $0x110] sm:$0xff]
    %v1457 = vld [vmem:[#allocation5 + $0x118] sm:$0xff]
    %v1458 = vld [vmem:[#allocation5 + $0x120] sm:$0xff]
    %v1459 = vld [vmem:[#allocation5 + $0x128] sm:$0xff]
    %v1460 = vld [vmem:[#allocation5 + $0x130] sm:$0xff]
    %v1461 = vld [vmem:[#allocation5 + $0x138] sm:$0xff]
    %v1462 = vld [vmem:[#allocation5 + $0x140] sm:$0xff]
    %v1463 = vld [vmem:[#allocation5 + $0x148] sm:$0xff]
    %v1464 = vld [vmem:[#allocation5 + $0x150] sm:$0xff]
    %v1465 = vld [vmem:[#allocation5 + $0x158] sm:$0xff]
    %v1466 = vld [vmem:[#allocation5 + $0x160] sm:$0xff]
    %v1467 = vld [vmem:[#allocation5 + $0x168] sm:$0xff]
    %v1468 = vld [vmem:[#allocation5 + $0x170] sm:$0xff]
    %v1469 = vld [vmem:[#allocation5 + $0x178] sm:$0xff]
    %v1470 = vld [vmem:[#allocation5 + $0x180] sm:$0xff]
    %v1471 = vld [vmem:[#allocation5 + $0x188] sm:$0xff]
    %v1472 = vld [vmem:[#allocation5 + $0x190] sm:$0xff]
    %v1473 = vld [vmem:[#allocation5 + $0x198] sm:$0xff]
    %v1474 = vld [vmem:[#allocation5 + $0x1a0] sm:$0xff]
    %v1475 = vld [vmem:[#allocation5 + $0x1a8] sm:$0xff]
    %v1476 = vld [vmem:[#allocation5 + $0x1b0] sm:$0xff]
    %v1477 = vld [vmem:[#allocation5 + $0x1b8] sm:$0xff]
    %v1478 = vld [vmem:[#allocation5 + $0x1c0] sm:$0xff]
    %v1479 = vld [vmem:[#allocation5 + $0x1c8] sm:$0xff]
    %v1480 = vld [vmem:[#allocation5 + $0x1d0] sm:$0xff]
    %v1481 = vld [vmem:[#allocation5 + $0x1d8] sm:$0xff]
    %v1482 = vld [vmem:[#allocation5 + $0x1e0] sm:$0xff]
    %v1483 = vld [vmem:[#allocation5 + $0x1e8] sm:$0xff]
    %v1484 = vld [vmem:[#allocation5 + $0x1f0] sm:$0xff]
    %v1485 = vld [vmem:[#allocation5 + $0x1f8] sm:$0xff]
    %v1486 = vld [vmem:[%s6] sm:$0x3]
    %v1488 = vlaneseq
    %v1489 = vshrl.u32 %v1488, 7
    %v1490 = vsub.s32 0, %v1489
    %v1491 = vrot.slane %v1486, %v1490
    %v1492 = vlaneseq
    %v1493 = vshrl.u32 %v1492, 7
    %v1494 = vsub.s32 1, %v1493
    %v1495 = vrot.slane %v1486, %v1494
    %1498 = vmatprep.subr.mxu0 %v1423
    %1499 = vmatpush1.msra.mxu0 %v1422
    %1500 = vmatprep.subr.mxu0 %v1425
    %1501 = vmatpush1.msra.mxu0 %v1424
    %1502 = vmatprep.subr.mxu0 %v1427
    %1503 = vmatpush1.msra.mxu0 %v1426
    %1504 = vmatprep.subr.mxu0 %v1429
    %1505 = vmatpush1.msra.mxu0 %v1428
    %1506 = vmatprep.subr.mxu0 %v1431
    %1507 = vmatpush1.msra.mxu0 %v1430
    %1508 = vmatprep.subr.mxu0 %v1433
    %1509 = vmatpush1.msra.mxu0 %v1432
    %1510 = vmatprep.subr.mxu0 %v1435
    %1511 = vmatpush1.msra.mxu0 %v1434
    %1512 = vmatprep.subr.mxu0 %v1437
    %1513 = vmatpush1.msra.mxu0 %v1436
    %1514 = vmatprep.subr.mxu0 %v1439
    %1515 = vmatpush1.msra.mxu0 %v1438
    %1516 = vmatprep.subr.mxu0 %v1441
    %1517 = vmatpush1.msra.mxu0 %v1440
    %1518 = vmatprep.subr.mxu0 %v1443
    %1519 = vmatpush1.msra.mxu0 %v1442
    %1520 = vmatprep.subr.mxu0 %v1445
    %1521 = vmatpush1.msra.mxu0 %v1444
    %1522 = vmatprep.subr.mxu0 %v1447
    %1523 = vmatpush1.msra.mxu0 %v1446
    %1524 = vmatprep.subr.mxu0 %v1449
    %1525 = vmatpush1.msra.mxu0 %v1448
    %1526 = vmatprep.subr.mxu0 %v1451
    %1527 = vmatpush1.msra.mxu0 %v1450
    %1528 = vmatprep.subr.mxu0 %v1453
    %1529 = vmatpush1.msra.mxu0 %v1452
    %1530 = vmatprep.subr.mxu0 %v1455
    %1531 = vmatpush1.msra.mxu0 %v1454
    %1532 = vmatprep.subr.mxu0 %v1457
    %1533 = vmatpush1.msra.mxu0 %v1456
    %1534 = vmatprep.subr.mxu0 %v1459
    %1535 = vmatpush1.msra.mxu0 %v1458
    %1536 = vmatprep.subr.mxu0 %v1461
    %1537 = vmatpush1.msra.mxu0 %v1460
    %1538 = vmatprep.subr.mxu0 %v1463
    %1539 = vmatpush1.msra.mxu0 %v1462
    %1540 = vmatprep.subr.mxu0 %v1465
    %1541 = vmatpush1.msra.mxu0 %v1464
    %1542 = vmatprep.subr.mxu0 %v1467
    %1543 = vmatpush1.msra.mxu0 %v1466
    %1544 = vmatprep.subr.mxu0 %v1469
    %1545 = vmatpush1.msra.mxu0 %v1468
    %1546 = vmatprep.subr.mxu0 %v1471
    %1547 = vmatpush1.msra.mxu0 %v1470
    %1548 = vmatprep.subr.mxu0 %v1473
    %1549 = vmatpush1.msra.mxu0 %v1472
    %1550 = vmatprep.subr.mxu0 %v1475
    %1551 = vmatpush1.msra.mxu0 %v1474
    %1552 = vmatprep.subr.mxu0 %v1477
    %1553 = vmatpush1.msra.mxu0 %v1476
    %1554 = vmatprep.subr.mxu0 %v1479
    %1555 = vmatpush1.msra.mxu0 %v1478
    %1556 = vmatprep.subr.mxu0 %v1481
    %1557 = vmatpush1.msra.mxu0 %v1480
    %1558 = vmatprep.subr.mxu0 %v1483
    %1559 = vmatpush1.msra.mxu0 %v1482
    %1560 = vmatprep.subr.mxu0 %v1485
    %1561 = vmatpush1.msra.mxu0 %v1484
    %1562 = vmatprep.mubr.f32.mxu0 %v1359
    %1563 = vmatmul.mubr.f32.gmra.mrb[0].mxu0 %v1358
    %v1564 = vpop.f32.mrb[0].mxu0
    %v1565 = vadd.f32 %v1491, %v1564
    %v1566 = vpop.f32.mrb[0].mxu0
    %v1567 = vadd.f32 %v1495, %v1566
    %1568 = vmatprep.mubr.f32.mxu0 %v1361
    %1569 = vmatmul.mubr.f32.gmra.mrb[0].mxu0 %v1360
    %v1570 = vpop.f32.mrb[0].mxu0
    %v1571 = vadd.f32 %v1491, %v1570
    %v1572 = vpop.f32.mrb[0].mxu0
    %v1573 = vadd.f32 %v1495, %v1572
    %1574 = vmatprep.mubr.f32.mxu0 %v1363
    %1575 = vmatmul.mubr.f32.gmra.mrb[0].mxu0 %v1362
    %v1576 = vpop.f32.mrb[0].mxu0
    %v1577 = vadd.f32 %v1491, %v1576
    %v1578 = vpop.f32.mrb[0].mxu0
    %v1579 = vadd.f32 %v1495, %v1578
    %1580 = vmatprep.mubr.f32.mxu0 %v1365
    %1581 = vmatmul.mubr.f32.gmra.mrb[0].mxu0 %v1364
    %v1582 = vpop.f32.mrb[0].mxu0
    %v1583 = vadd.f32 %v1491, %v1582
    %v1584 = vpop.f32.mrb[0].mxu0
    %v1585 = vadd.f32 %v1495, %v1584
    %1586 = vmatprep.mubr.f32.mxu0 %v1367
    %1587 = vmatmul.mubr.f32.gmra.mrb[0].mxu0 %v1366
    %v1588 = vpop.f32.mrb[0].mxu0
    %v1589 = vadd.f32 %v1491, %v1588
    %v1590 = vpop.f32.mrb[0].mxu0
    %v1591 = vadd.f32 %v1495, %v1590
    %1592 = vmatprep.mubr.f32.mxu0 %v1369
    %1593 = vmatmul.mubr.f32.gmra.mrb[0].mxu0 %v1368
    %v1594 = vpop.f32.mrb[0].mxu0
    %v1595 = vadd.f32 %v1491, %v1594
    %v1596 = vpop.f32.mrb[0].mxu0
    %v1597 = vadd.f32 %v1495, %v1596
    %1598 = vmatprep.mubr.f32.mxu0 %v1371
    %1599 = vmatmul.mubr.f32.gmra.mrb[0].mxu0 %v1370
    %v1600 = vpop.f32.mrb[0].mxu0
    %v1601 = vadd.f32 %v1491, %v1600
    %v1602 = vpop.f32.mrb[0].mxu0
    %v1603 = vadd.f32 %v1495, %v1602
    %1604 = vmatprep.mubr.f32.mxu0 %v1373
    %1605 = vmatmul.mubr.f32.gmra.mrb[0].mxu0 %v1372
    %v1606 = vpop.f32.mrb[0].mxu0
    %v1607 = vadd.f32 %v1491, %v1606
    %v1608 = vpop.f32.mrb[0].mxu0
    %v1609 = vadd.f32 %v1495, %v1608
    %1610 = vmatprep.mubr.f32.mxu0 %v1375
    %1611 = vmatmul.mubr.f32.gmra.mrb[0].mxu0 %v1374
    %v1612 = vpop.f32.mrb[0].mxu0
    %v1613 = vadd.f32 %v1491, %v1612
    %v1614 = vpop.f32.mrb[0].mxu0
    %v1615 = vadd.f32 %v1495, %v1614
    %1616 = vmatprep.mubr.f32.mxu0 %v1377
    %1617 = vmatmul.mubr.f32.gmra.mrb[0].mxu0 %v1376
    %v1618 = vpop.f32.mrb[0].mxu0
    %v1619 = vadd.f32 %v1491, %v1618
    %v1620 = vpop.f32.mrb[0].mxu0
    %v1621 = vadd.f32 %v1495, %v1620
    %1622 = vmatprep.mubr.f32.mxu0 %v1379
    %1623 = vmatmul.mubr.f32.gmra.mrb[0].mxu0 %v1378
    %v1624 = vpop.f32.mrb[0].mxu0
    %v1625 = vadd.f32 %v1491, %v1624
    %v1626 = vpop.f32.mrb[0].mxu0
    %v1627 = vadd.f32 %v1495, %v1626
    %1628 = vmatprep.mubr.f32.mxu0 %v1381
    %1629 = vmatmul.mubr.f32.gmra.mrb[0].mxu0 %v1380
    %v1630 = vpop.f32.mrb[0].mxu0
    %v1631 = vadd.f32 %v1491, %v1630
    %v1632 = vpop.f32.mrb[0].mxu0
    %v1633 = vadd.f32 %v1495, %v1632
    %1634 = vmatprep.mubr.f32.mxu0 %v1383
    %1635 = vmatmul.mubr.f32.gmra.mrb[0].mxu0 %v1382
    %v1636 = vpop.f32.mrb[0].mxu0
    %v1637 = vadd.f32 %v1491, %v1636
    %v1638 = vpop.f32.mrb[0].mxu0
    %v1639 = vadd.f32 %v1495, %v1638
    %1640 = vmatprep.mubr.f32.mxu0 %v1385
    %1641 = vmatmul.mubr.f32.gmra.mrb[0].mxu0 %v1384
    %v1642 = vpop.f32.mrb[0].mxu0
    %v1643 = vadd.f32 %v1491, %v1642
    %v1644 = vpop.f32.mrb[0].mxu0
    %v1645 = vadd.f32 %v1495, %v1644
    %1646 = vmatprep.mubr.f32.mxu0 %v1387
    %1647 = vmatmul.mubr.f32.gmra.mrb[0].mxu0 %v1386
    %v1648 = vpop.f32.mrb[0].mxu0
    %v1649 = vadd.f32 %v1491, %v1648
    %v1650 = vpop.f32.mrb[0].mxu0
    %v1651 = vadd.f32 %v1495, %v1650
    %1652 = vmatprep.mubr.f32.mxu0 %v1389
    %1653 = vmatmul.mubr.f32.gmra.mrb[0].mxu0 %v1388
    %v1654 = vpop.f32.mrb[0].mxu0
    %v1655 = vadd.f32 %v1491, %v1654
    %v1656 = vpop.f32.mrb[0].mxu0
    %v1657 = vadd.f32 %v1495, %v1656
    %1658 = vmatprep.mubr.f32.mxu0 %v1391
    %1659 = vmatmul.mubr.f32.gmra.mrb[0].mxu0 %v1390
    %v1660 = vpop.f32.mrb[0].mxu0
    %v1661 = vadd.f32 %v1491, %v1660
    %v1662 = vpop.f32.mrb[0].mxu0
    %v1663 = vadd.f32 %v1495, %v1662
    %1664 = vmatprep.mubr.f32.mxu0 %v1393
    %1665 = vmatmul.mubr.f32.gmra.mrb[0].mxu0 %v1392
    %v1666 = vpop.f32.mrb[0].mxu0
    %v1667 = vadd.f32 %v1491, %v1666
    %v1668 = vpop.f32.mrb[0].mxu0
    %v1669 = vadd.f32 %v1495, %v1668
    %1670 = vmatprep.mubr.f32.mxu0 %v1395
    %1671 = vmatmul.mubr.f32.gmra.mrb[0].mxu0 %v1394
    %v1672 = vpop.f32.mrb[0].mxu0
    %v1673 = vadd.f32 %v1491, %v1672
    %v1674 = vpop.f32.mrb[0].mxu0
    %v1675 = vadd.f32 %v1495, %v1674
    %1676 = vmatprep.mubr.f32.mxu0 %v1397
    %1677 = vmatmul.mubr.f32.gmra.mrb[0].mxu0 %v1396
    %v1678 = vpop.f32.mrb[0].mxu0
    %v1679 = vadd.f32 %v1491, %v1678
    %v1680 = vpop.f32.mrb[0].mxu0
    %v1681 = vadd.f32 %v1495, %v1680
    %1682 = vmatprep.mubr.f32.mxu0 %v1399
    %1683 = vmatmul.mubr.f32.gmra.mrb[0].mxu0 %v1398
    %v1684 = vpop.f32.mrb[0].mxu0
    %v1685 = vadd.f32 %v1491, %v1684
    %v1686 = vpop.f32.mrb[0].mxu0
    %v1687 = vadd.f32 %v1495, %v1686
    %1688 = vmatprep.mubr.f32.mxu0 %v1401
    %1689 = vmatmul.mubr.f32.gmra.mrb[0].mxu0 %v1400
    %v1690 = vpop.f32.mrb[0].mxu0
    %v1691 = vadd.f32 %v1491, %v1690
    %v1692 = vpop.f32.mrb[0].mxu0
    %v1693 = vadd.f32 %v1495, %v1692
    %1694 = vmatprep.mubr.f32.mxu0 %v1403
    %1695 = vmatmul.mubr.f32.gmra.mrb[0].mxu0 %v1402
    %v1696 = vpop.f32.mrb[0].mxu0
    %v1697 = vadd.f32 %v1491, %v1696
    %v1698 = vpop.f32.mrb[0].mxu0
    %v1699 = vadd.f32 %v1495, %v1698
    %1700 = vmatprep.mubr.f32.mxu0 %v1405
    %1701 = vmatmul.mubr.f32.gmra.mrb[0].mxu0 %v1404
    %v1702 = vpop.f32.mrb[0].mxu0
    %v1703 = vadd.f32 %v1491, %v1702
    %v1704 = vpop.f32.mrb[0].mxu0
    %v1705 = vadd.f32 %v1495, %v1704
    %1706 = vmatprep.mubr.f32.mxu0 %v1407
    %1707 = vmatmul.mubr.f32.gmra.mrb[0].mxu0 %v1406
    %v1708 = vpop.f32.mrb[0].mxu0
    %v1709 = vadd.f32 %v1491, %v1708
    %v1710 = vpop.f32.mrb[0].mxu0
    %v1711 = vadd.f32 %v1495, %v1710
    %1712 = vmatprep.mubr.f32.mxu0 %v1409
    %1713 = vmatmul.mubr.f32.gmra.mrb[0].mxu0 %v1408
    %v1714 = vpop.f32.mrb[0].mxu0
    %v1715 = vadd.f32 %v1491, %v1714
    %v1716 = vpop.f32.mrb[0].mxu0
    %v1717 = vadd.f32 %v1495, %v1716
    %1718 = vmatprep.mubr.f32.mxu0 %v1411
    %1719 = vmatmul.mubr.f32.gmra.mrb[0].mxu0 %v1410
    %v1720 = vpop.f32.mrb[0].mxu0
    %v1721 = vadd.f32 %v1491, %v1720
    %v1722 = vpop.f32.mrb[0].mxu0
    %v1723 = vadd.f32 %v1495, %v1722
    %1724 = vmatprep.mubr.f32.mxu0 %v1413
    %1725 = vmatmul.mubr.f32.gmra.mrb[0].mxu0 %v1412
    %v1726 = vpop.f32.mrb[0].mxu0
    %v1727 = vadd.f32 %v1491, %v1726
    %v1728 = vpop.f32.mrb[0].mxu0
    %v1729 = vadd.f32 %v1495, %v1728
    %1730 = vmatprep.mubr.f32.mxu0 %v1415
    %1731 = vmatmul.mubr.f32.gmra.mrb[0].mxu0 %v1414
    %v1732 = vpop.f32.mrb[0].mxu0
    %v1733 = vadd.f32 %v1491, %v1732
    %v1734 = vpop.f32.mrb[0].mxu0
    %v1735 = vadd.f32 %v1495, %v1734
    %1736 = vmatprep.mubr.f32.mxu0 %v1417
    %1737 = vmatmul.mubr.f32.gmra.mrb[0].mxu0 %v1416
    %v1738 = vpop.f32.mrb[0].mxu0
    %v1739 = vadd.f32 %v1491, %v1738
    %v1740 = vpop.f32.mrb[0].mxu0
    %v1741 = vadd.f32 %v1495, %v1740
    %1742 = vmatprep.mubr.f32.mxu0 %v1419
    %1743 = vmatmul.mubr.f32.gmra.mrb[0].mxu0 %v1418
    %v1744 = vpop.f32.mrb[0].mxu0
    %v1745 = vadd.f32 %v1491, %v1744
    %v1746 = vpop.f32.mrb[0].mxu0
    %v1747 = vadd.f32 %v1495, %v1746
    %1748 = vmatprep.mubr.f32.mxu0 %v1421
    %1749 = vmatmul.mubr.f32.gmra.mrb[0].mxu0 %v1420
    %v1750 = vpop.f32.mrb[0].mxu0
    %v1751 = vadd.f32 %v1491, %v1750
    %v1752 = vpop.f32.mrb[0].mxu0
    %v1753 = vadd.f32 %v1495, %v1752
    %1754 = vdwg.mxu0
    %v1755 = vmax.f32 %v1565, 0.0
    %v1756 = vmax.f32 %v1567, 0.0
    %v1757 = vmax.f32 %v1571, 0.0
    %v1758 = vmax.f32 %v1573, 0.0
    %v1759 = vmax.f32 %v1577, 0.0
    %v1760 = vmax.f32 %v1579, 0.0
    %v1761 = vmax.f32 %v1583, 0.0
    %v1762 = vmax.f32 %v1585, 0.0
    %v1763 = vmax.f32 %v1589, 0.0
    %v1764 = vmax.f32 %v1591, 0.0
    %v1765 = vmax.f32 %v1595, 0.0
    %v1766 = vmax.f32 %v1597, 0.0
    %v1767 = vmax.f32 %v1601, 0.0
    %v1768 = vmax.f32 %v1603, 0.0
    %v1769 = vmax.f32 %v1607, 0.0
    %v1770 = vmax.f32 %v1609, 0.0
    %v1771 = vmax.f32 %v1613, 0.0
    %v1772 = vmax.f32 %v1615, 0.0
    %v1773 = vmax.f32 %v1619, 0.0
    %v1774 = vmax.f32 %v1621, 0.0
    %v1775 = vmax.f32 %v1625, 0.0
    %v1776 = vmax.f32 %v1627, 0.0
    %v1777 = vmax.f32 %v1631, 0.0
    %v1778 = vmax.f32 %v1633, 0.0
    %v1779 = vmax.f32 %v1637, 0.0
    %v1780 = vmax.f32 %v1639, 0.0
    %v1781 = vmax.f32 %v1643, 0.0
    %v1782 = vmax.f32 %v1645, 0.0
    %v1783 = vmax.f32 %v1649, 0.0
    %v1784 = vmax.f32 %v1651, 0.0
    %v1785 = vmax.f32 %v1655, 0.0
    %v1786 = vmax.f32 %v1657, 0.0
    %v1787 = vmax.f32 %v1661, 0.0
    %v1788 = vmax.f32 %v1663, 0.0
    %v1789 = vmax.f32 %v1667, 0.0
    %v1790 = vmax.f32 %v1669, 0.0
    %v1791 = vmax.f32 %v1673, 0.0
    %v1792 = vmax.f32 %v1675, 0.0
    %v1793 = vmax.f32 %v1679, 0.0
    %v1794 = vmax.f32 %v1681, 0.0
    %v1795 = vmax.f32 %v1685, 0.0
    %v1796 = vmax.f32 %v1687, 0.0
    %v1797 = vmax.f32 %v1691, 0.0
    %v1798 = vmax.f32 %v1693, 0.0
    %v1799 = vmax.f32 %v1697, 0.0
    %v1800 = vmax.f32 %v1699, 0.0
    %v1801 = vmax.f32 %v1703, 0.0
    %v1802 = vmax.f32 %v1705, 0.0
    %v1803 = vmax.f32 %v1709, 0.0
    %v1804 = vmax.f32 %v1711, 0.0
    %v1805 = vmax.f32 %v1715, 0.0
    %v1806 = vmax.f32 %v1717, 0.0
    %v1807 = vmax.f32 %v1721, 0.0
    %v1808 = vmax.f32 %v1723, 0.0
    %v1809 = vmax.f32 %v1727, 0.0
    %v1810 = vmax.f32 %v1729, 0.0
    %v1811 = vmax.f32 %v1733, 0.0
    %v1812 = vmax.f32 %v1735, 0.0
    %v1813 = vmax.f32 %v1739, 0.0
    %v1814 = vmax.f32 %v1741, 0.0
    %v1815 = vmax.f32 %v1745, 0.0
    %v1816 = vmax.f32 %v1747, 0.0
    %v1817 = vmax.f32 %v1751, 0.0
    %v1818 = vmax.f32 %v1753, 0.0
    %v1819 = vld [vmem:[%s7] sm:$0xff]
    %v1820 = vld [vmem:[%s7 + $0x8] sm:$0xff]
    %v1821 = vld [vmem:[%s7 + $0x10] sm:$0xff]
    %v1822 = vld [vmem:[%s7 + $0x18] sm:$0xff]
    %v1823 = vld [vmem:[%s7 + $0x20] sm:$0xff]
    %v1824 = vld [vmem:[%s7 + $0x28] sm:$0xff]
    %v1825 = vld [vmem:[%s7 + $0x30] sm:$0xff]
    %v1826 = vld [vmem:[%s7 + $0x38] sm:$0xff]
    %v1827 = vld [vmem:[%s7 + $0x40] sm:$0xff]
    %v1828 = vld [vmem:[%s7 + $0x48] sm:$0xff]
    %v1829 = vld [vmem:[%s7 + $0x50] sm:$0xff]
    %v1830 = vld [vmem:[%s7 + $0x58] sm:$0xff]
    %v1831 = vld [vmem:[%s7 + $0x60] sm:$0xff]
    %v1832 = vld [vmem:[%s7 + $0x68] sm:$0xff]
    %v1833 = vld [vmem:[%s7 + $0x70] sm:$0xff]
    %v1834 = vld [vmem:[%s7 + $0x78] sm:$0xff]
    %v1835 = vld [vmem:[%s7 + $0x80] sm:$0xff]
    %v1836 = vld [vmem:[%s7 + $0x88] sm:$0xff]
    %v1837 = vld [vmem:[%s7 + $0x90] sm:$0xff]
    %v1838 = vld [vmem:[%s7 + $0x98] sm:$0xff]
    %v1839 = vld [vmem:[%s7 + $0xa0] sm:$0xff]
    %v1840 = vld [vmem:[%s7 + $0xa8] sm:$0xff]
    %v1841 = vld [vmem:[%s7 + $0xb0] sm:$0xff]
    %v1842 = vld [vmem:[%s7 + $0xb8] sm:$0xff]
    %v1843 = vld [vmem:[%s7 + $0xc0] sm:$0xff]
    %v1844 = vld [vmem:[%s7 + $0xc8] sm:$0xff]
    %v1845 = vld [vmem:[%s7 + $0xd0] sm:$0xff]
    %v1846 = vld [vmem:[%s7 + $0xd8] sm:$0xff]
    %v1847 = vld [vmem:[%s7 + $0xe0] sm:$0xff]
    %v1848 = vld [vmem:[%s7 + $0xe8] sm:$0xff]
    %v1849 = vld [vmem:[%s7 + $0xf0] sm:$0xff]
    %v1850 = vld [vmem:[%s7 + $0xf8] sm:$0xff]
    %v1851 = vld [vmem:[%s8] sm:$0x1]
    %v1853 = vlaneseq
    %v1854 = vshrl.u32 %v1853, 7
    %v1855 = vsub.s32 0, %v1854
    %v1856 = vrot.slane %v1851, %v1855
    %1858 = vmatprep.subr.mxu0 0.0
    %1859 = vmatpush1.msra.mxu0 %v1819
    %1860 = vmatprep.subr.mxu0 0.0
    %1861 = vmatpush1.msra.mxu0 %v1820
    %1862 = vmatprep.subr.mxu0 0.0
    %1863 = vmatpush1.msra.mxu0 %v1821
    %1864 = vmatprep.subr.mxu0 0.0
    %1865 = vmatpush1.msra.mxu0 %v1822
    %1866 = vmatprep.subr.mxu0 0.0
    %1867 = vmatpush1.msra.mxu0 %v1823
    %1868 = vmatprep.subr.mxu0 0.0
    %1869 = vmatpush1.msra.mxu0 %v1824
    %1870 = vmatprep.subr.mxu0 0.0
    %1871 = vmatpush1.msra.mxu0 %v1825
    %1872 = vmatprep.subr.mxu0 0.0
    %1873 = vmatpush1.msra.mxu0 %v1826
    %1874 = vmatprep.subr.mxu0 0.0
    %1875 = vmatpush1.msra.mxu0 %v1827
    %1876 = vmatprep.subr.mxu0 0.0
    %1877 = vmatpush1.msra.mxu0 %v1828
    %1878 = vmatprep.subr.mxu0 0.0
    %1879 = vmatpush1.msra.mxu0 %v1829
    %1880 = vmatprep.subr.mxu0 0.0
    %1881 = vmatpush1.msra.mxu0 %v1830
    %1882 = vmatprep.subr.mxu0 0.0
    %1883 = vmatpush1.msra.mxu0 %v1831
    %1884 = vmatprep.subr.mxu0 0.0
    %1885 = vmatpush1.msra.mxu0 %v1832
    %1886 = vmatprep.subr.mxu0 0.0
    %1887 = vmatpush1.msra.mxu0 %v1833
    %1888 = vmatprep.subr.mxu0 0.0
    %1889 = vmatpush1.msra.mxu0 %v1834
    %1890 = vmatprep.subr.mxu0 0.0
    %1891 = vmatpush1.msra.mxu0 %v1835
    %1892 = vmatprep.subr.mxu0 0.0
    %1893 = vmatpush1.msra.mxu0 %v1836
    %1894 = vmatprep.subr.mxu0 0.0
    %1895 = vmatpush1.msra.mxu0 %v1837
    %1896 = vmatprep.subr.mxu0 0.0
    %1897 = vmatpush1.msra.mxu0 %v1838
    %1898 = vmatprep.subr.mxu0 0.0
    %1899 = vmatpush1.msra.mxu0 %v1839
    %1900 = vmatprep.subr.mxu0 0.0
    %1901 = vmatpush1.msra.mxu0 %v1840
    %1902 = vmatprep.subr.mxu0 0.0
    %1903 = vmatpush1.msra.mxu0 %v1841
    %1904 = vmatprep.subr.mxu0 0.0
    %1905 = vmatpush1.msra.mxu0 %v1842
    %1906 = vmatprep.subr.mxu0 0.0
    %1907 = vmatpush1.msra.mxu0 %v1843
    %1908 = vmatprep.subr.mxu0 0.0
    %1909 = vmatpush1.msra.mxu0 %v1844
    %1910 = vmatprep.subr.mxu0 0.0
    %1911 = vmatpush1.msra.mxu0 %v1845
    %1912 = vmatprep.subr.mxu0 0.0
    %1913 = vmatpush1.msra.mxu0 %v1846
    %1914 = vmatprep.subr.mxu0 0.0
    %1915 = vmatpush1.msra.mxu0 %v1847
    %1916 = vmatprep.subr.mxu0 0.0
    %1917 = vmatpush1.msra.mxu0 %v1848
    %1918 = vmatprep.subr.mxu0 0.0
    %1919 = vmatpush1.msra.mxu0 %v1849
    %1920 = vmatprep.subr.mxu0 0.0
    %1921 = vmatpush1.msra.mxu0 %v1850
    %1922 = vmatprep.mubr.f32.mxu0 %v1756
    %1923 = vmatmul.mubr.f32.gmra.mrb[0].mxu0 %v1755
    %v1924 = vpop.f32.mrb[0].mxu0
    %v1925 = vadd.f32 %v1856, %v1924
    %v1926 = vpop.f32.mrb[0].mxu0
    %1927 = vmatprep.mubr.f32.mxu0 %v1758
    %1928 = vmatmul.mubr.f32.gmra.mrb[0].mxu0 %v1757
    %v1929 = vpop.f32.mrb[0].mxu0
    %v1930 = vadd.f32 %v1856, %v1929
    %v1931 = vpop.f32.mrb[0].mxu0
    %1932 = vmatprep.mubr.f32.mxu0 %v1760
    %1933 = vmatmul.mubr.f32.gmra.mrb[0].mxu0 %v1759
    %v1934 = vpop.f32.mrb[0].mxu0
    %v1935 = vadd.f32 %v1856, %v1934
    %v1936 = vpop.f32.mrb[0].mxu0
    %1937 = vmatprep.mubr.f32.mxu0 %v1762
    %1938 = vmatmul.mubr.f32.gmra.mrb[0].mxu0 %v1761
    %v1939 = vpop.f32.mrb[0].mxu0
    %v1940 = vadd.f32 %v1856, %v1939
    %v1941 = vpop.f32.mrb[0].mxu0
    %1942 = vmatprep.mubr.f32.mxu0 %v1764
    %1943 = vmatmul.mubr.f32.gmra.mrb[0].mxu0 %v1763
    %v1944 = vpop.f32.mrb[0].mxu0
    %v1945 = vadd.f32 %v1856, %v1944
    %v1946 = vpop.f32.mrb[0].mxu0
    %1947 = vmatprep.mubr.f32.mxu0 %v1766
    %1948 = vmatmul.mubr.f32.gmra.mrb[0].mxu0 %v1765
    %v1949 = vpop.f32.mrb[0].mxu0
    %v1950 = vadd.f32 %v1856, %v1949
    %v1951 = vpop.f32.mrb[0].mxu0
    %1952 = vmatprep.mubr.f32.mxu0 %v1768
    %1953 = vmatmul.mubr.f32.gmra.mrb[0].mxu0 %v1767
    %v1954 = vpop.f32.mrb[0].mxu0
    %v1955 = vadd.f32 %v1856, %v1954
    %v1956 = vpop.f32.mrb[0].mxu0
    %1957 = vmatprep.mubr.f32.mxu0 %v1770
    %1958 = vmatmul.mubr.f32.gmra.mrb[0].mxu0 %v1769
    %v1959 = vpop.f32.mrb[0].mxu0
    %v1960 = vadd.f32 %v1856, %v1959
    %v1961 = vpop.f32.mrb[0].mxu0
    %1962 = vmatprep.mubr.f32.mxu0 %v1772
    %1963 = vmatmul.mubr.f32.gmra.mrb[0].mxu0 %v1771
    %v1964 = vpop.f32.mrb[0].mxu0
    %v1965 = vadd.f32 %v1856, %v1964
    %v1966 = vpop.f32.mrb[0].mxu0
    %1967 = vmatprep.mubr.f32.mxu0 %v1774
    %1968 = vmatmul.mubr.f32.gmra.mrb[0].mxu0 %v1773
    %v1969 = vpop.f32.mrb[0].mxu0
    %v1970 = vadd.f32 %v1856, %v1969
    %v1971 = vpop.f32.mrb[0].mxu0
    %1972 = vmatprep.mubr.f32.mxu0 %v1776
    %1973 = vmatmul.mubr.f32.gmra.mrb[0].mxu0 %v1775
    %v1974 = vpop.f32.mrb[0].mxu0
    %v1975 = vadd.f32 %v1856, %v1974
    %v1976 = vpop.f32.mrb[0].mxu0
    %1977 = vmatprep.mubr.f32.mxu0 %v1778
    %1978 = vmatmul.mubr.f32.gmra.mrb[0].mxu0 %v1777
    %v1979 = vpop.f32.mrb[0].mxu0
    %v1980 = vadd.f32 %v1856, %v1979
    %v1981 = vpop.f32.mrb[0].mxu0
    %1982 = vmatprep.mubr.f32.mxu0 %v1780
    %1983 = vmatmul.mubr.f32.gmra.mrb[0].mxu0 %v1779
    %v1984 = vpop.f32.mrb[0].mxu0
    %v1985 = vadd.f32 %v1856, %v1984
    %v1986 = vpop.f32.mrb[0].mxu0
    %1987 = vmatprep.mubr.f32.mxu0 %v1782
    %1988 = vmatmul.mubr.f32.gmra.mrb[0].mxu0 %v1781
    %v1989 = vpop.f32.mrb[0].mxu0
    %v1990 = vadd.f32 %v1856, %v1989
    %v1991 = vpop.f32.mrb[0].mxu0
    %1992 = vmatprep.mubr.f32.mxu0 %v1784
    %1993 = vmatmul.mubr.f32.gmra.mrb[0].mxu0 %v1783
    %v1994 = vpop.f32.mrb[0].mxu0
    %v1995 = vadd.f32 %v1856, %v1994
    %v1996 = vpop.f32.mrb[0].mxu0
    %1997 = vmatprep.mubr.f32.mxu0 %v1786
    %1998 = vmatmul.mubr.f32.gmra.mrb[0].mxu0 %v1785
    %v1999 = vpop.f32.mrb[0].mxu0
    %v2000 = vadd.f32 %v1856, %v1999
    %v2001 = vpop.f32.mrb[0].mxu0
    %2002 = vmatprep.mubr.f32.mxu0 %v1788
    %2003 = vmatmul.mubr.f32.gmra.mrb[0].mxu0 %v1787
    %v2004 = vpop.f32.mrb[0].mxu0
    %v2005 = vadd.f32 %v1856, %v2004
    %v2006 = vpop.f32.mrb[0].mxu0
    %2007 = vmatprep.mubr.f32.mxu0 %v1790
    %2008 = vmatmul.mubr.f32.gmra.mrb[0].mxu0 %v1789
    %v2009 = vpop.f32.mrb[0].mxu0
    %v2010 = vadd.f32 %v1856, %v2009
    %v2011 = vpop.f32.mrb[0].mxu0
    %2012 = vmatprep.mubr.f32.mxu0 %v1792
    %2013 = vmatmul.mubr.f32.gmra.mrb[0].mxu0 %v1791
    %v2014 = vpop.f32.mrb[0].mxu0
    %v2015 = vadd.f32 %v1856, %v2014
    %v2016 = vpop.f32.mrb[0].mxu0
    %2017 = vmatprep.mubr.f32.mxu0 %v1794
    %2018 = vmatmul.mubr.f32.gmra.mrb[0].mxu0 %v1793
    %v2019 = vpop.f32.mrb[0].mxu0
    %v2020 = vadd.f32 %v1856, %v2019
    %v2021 = vpop.f32.mrb[0].mxu0
    %2022 = vmatprep.mubr.f32.mxu0 %v1796
    %2023 = vmatmul.mubr.f32.gmra.mrb[0].mxu0 %v1795
    %v2024 = vpop.f32.mrb[0].mxu0
    %v2025 = vadd.f32 %v1856, %v2024
    %v2026 = vpop.f32.mrb[0].mxu0
    %2027 = vmatprep.mubr.f32.mxu0 %v1798
    %2028 = vmatmul.mubr.f32.gmra.mrb[0].mxu0 %v1797
    %v2029 = vpop.f32.mrb[0].mxu0
    %v2030 = vadd.f32 %v1856, %v2029
    %v2031 = vpop.f32.mrb[0].mxu0
    %2032 = vmatprep.mubr.f32.mxu0 %v1800
    %2033 = vmatmul.mubr.f32.gmra.mrb[0].mxu0 %v1799
    %v2034 = vpop.f32.mrb[0].mxu0
    %v2035 = vadd.f32 %v1856, %v2034
    %v2036 = vpop.f32.mrb[0].mxu0
    %2037 = vmatprep.mubr.f32.mxu0 %v1802
    %2038 = vmatmul.mubr.f32.gmra.mrb[0].mxu0 %v1801
    %v2039 = vpop.f32.mrb[0].mxu0
    %v2040 = vadd.f32 %v1856, %v2039
    %v2041 = vpop.f32.mrb[0].mxu0
    %2042 = vmatprep.mubr.f32.mxu0 %v1804
    %2043 = vmatmul.mubr.f32.gmra.mrb[0].mxu0 %v1803
    %v2044 = vpop.f32.mrb[0].mxu0
    %v2045 = vadd.f32 %v1856, %v2044
    %v2046 = vpop.f32.mrb[0].mxu0
    %2047 = vmatprep.mubr.f32.mxu0 %v1806
    %2048 = vmatmul.mubr.f32.gmra.mrb[0].mxu0 %v1805
    %v2049 = vpop.f32.mrb[0].mxu0
    %v2050 = vadd.f32 %v1856, %v2049
    %v2051 = vpop.f32.mrb[0].mxu0
    %2052 = vmatprep.mubr.f32.mxu0 %v1808
    %2053 = vmatmul.mubr.f32.gmra.mrb[0].mxu0 %v1807
    %v2054 = vpop.f32.mrb[0].mxu0
    %v2055 = vadd.f32 %v1856, %v2054
    %v2056 = vpop.f32.mrb[0].mxu0
    %2057 = vmatprep.mubr.f32.mxu0 %v1810
    %2058 = vmatmul.mubr.f32.gmra.mrb[0].mxu0 %v1809
    %v2059 = vpop.f32.mrb[0].mxu0
    %v2060 = vadd.f32 %v1856, %v2059
    %v2061 = vpop.f32.mrb[0].mxu0
    %2062 = vmatprep.mubr.f32.mxu0 %v1812
    %2063 = vmatmul.mubr.f32.gmra.mrb[0].mxu0 %v1811
    %v2064 = vpop.f32.mrb[0].mxu0
    %v2065 = vadd.f32 %v1856, %v2064
    %v2066 = vpop.f32.mrb[0].mxu0
    %2067 = vmatprep.mubr.f32.mxu0 %v1814
    %2068 = vmatmul.mubr.f32.gmra.mrb[0].mxu0 %v1813
    %v2069 = vpop.f32.mrb[0].mxu0
    %v2070 = vadd.f32 %v1856, %v2069
    %v2071 = vpop.f32.mrb[0].mxu0
    %2072 = vmatprep.mubr.f32.mxu0 %v1816
    %2073 = vmatmul.mubr.f32.gmra.mrb[0].mxu0 %v1815
    %v2074 = vpop.f32.mrb[0].mxu0
    %v2075 = vadd.f32 %v1856, %v2074
    %v2076 = vpop.f32.mrb[0].mxu0
    %2077 = vmatprep.mubr.f32.mxu0 %v1818
    %2078 = vmatmul.mubr.f32.gmra.mrb[0].mxu0 %v1817
    %v2079 = vpop.f32.mrb[0].mxu0
    %v2080 = vadd.f32 %v1856, %v2079
    %v2081 = vpop.f32.mrb[0].mxu0
    %2082 = vdwg.mxu0
    %2083 = vst [vmem:[#allocation7] sm:$0xff] %v1925
    %2084 = vst [vmem:[#allocation7 + $0x8] sm:$0xff] %v1930
    %2085 = vst [vmem:[#allocation7 + $0x10] sm:$0xff] %v1935
    %2086 = vst [vmem:[#allocation7 + $0x18] sm:$0xff] %v1940
    %2087 = vst [vmem:[#allocation7 + $0x20] sm:$0xff] %v1945
    %2088 = vst [vmem:[#allocation7 + $0x28] sm:$0xff] %v1950
    %2089 = vst [vmem:[#allocation7 + $0x30] sm:$0xff] %v1955
    %2090 = vst [vmem:[#allocation7 + $0x38] sm:$0xff] %v1960
    %2091 = vst [vmem:[#allocation7 + $0x40] sm:$0xff] %v1965
    %2092 = vst [vmem:[#allocation7 + $0x48] sm:$0xff] %v1970
    %2093 = vst [vmem:[#allocation7 + $0x50] sm:$0xff] %v1975
    %2094 = vst [vmem:[#allocation7 + $0x58] sm:$0xff] %v1980
    %2095 = vst [vmem:[#allocation7 + $0x60] sm:$0xff] %v1985
    %2096 = vst [vmem:[#allocation7 + $0x68] sm:$0xff] %v1990
    %2097 = vst [vmem:[#allocation7 + $0x70] sm:$0xff] %v1995
    %2098 = vst [vmem:[#allocation7 + $0x78] sm:$0xff] %v2000
    %2099 = vst [vmem:[#allocation7 + $0x80] sm:$0xff] %v2005
    %2100 = vst [vmem:[#allocation7 + $0x88] sm:$0xff] %v2010
    %2101 = vst [vmem:[#allocation7 + $0x90] sm:$0xff] %v2015
    %2102 = vst [vmem:[#allocation7 + $0x98] sm:$0xff] %v2020
    %2103 = vst [vmem:[#allocation7 + $0xa0] sm:$0xff] %v2025
    %2104 = vst [vmem:[#allocation7 + $0xa8] sm:$0xff] %v2030
    %2105 = vst [vmem:[#allocation7 + $0xb0] sm:$0xff] %v2035
    %2106 = vst [vmem:[#allocation7 + $0xb8] sm:$0xff] %v2040
    %2107 = vst [vmem:[#allocation7 + $0xc0] sm:$0xff] %v2045
    %2108 = vst [vmem:[#allocation7 + $0xc8] sm:$0xff] %v2050
    %2109 = vst [vmem:[#allocation7 + $0xd0] sm:$0xff] %v2055
    %2110 = vst [vmem:[#allocation7 + $0xd8] sm:$0xff] %v2060
    %2111 = vst [vmem:[#allocation7 + $0xe0] sm:$0xff] %v2065
    %2112 = vst [vmem:[#allocation7 + $0xe8] sm:$0xff] %v2070
    %2113 = vst [vmem:[#allocation7 + $0xf0] sm:$0xff] %v2075
    %2114 = vst [vmem:[#allocation7 + $0xf8] sm:$0xff] %v2080
    // Predicated region
    $region46: #{tpu_custom_call.1} parent=1 // pred_check
      _
    $region47: #{tpu_custom_call.1} parent=1 // pred_check_branch
      %2116 = sbr.rel (0) target = $region49
    $region48: #{tpu_custom_call.1} parent=1 // pred_region
      %s2118 = ssub.s32 4096, 4096
      %2119 = vsyncadd [#allocation4], %s2118
      %s2120 = sshll.u32 [#allocation7], 4
      %s2121 = int_to_ptr.vmem [resolvable:$true] %s2120
      %2126 = dma.vmem_to_hbm [thread:$0]  %s2121, 4096, %s9, [#allocation4], 128, 128, 8
    $region49: #{tpu_custom_call.1} parent=1 // pred_fallthru
      _
    // Predicated region
    $region50: #{tpu_custom_call.1} parent=1 // pred_check
      _
    $region51: #{tpu_custom_call.1} parent=1 // pred_check_branch
      %2128 = sbr.rel (0) target = $region53
    $region52: #{tpu_custom_call.1} parent=1 // pred_region
      %2129 = dma.done [#allocation4], 4096
    $region53: #{tpu_custom_call.1} parent=1 // pred_fallthru
      _
    %2130 = vsyncpa [#allocation3], 1
    %2131 = vsyncpa [#allocation6], 1
    %2132 = vsyncpa [#allocation4], 1

</llo_original>
